<compile_context>
chip_gen: v7x
topology: tpu7x:2x2x1
jax: 0.10.0
libtpu: 0.0.40
codegen_flags: <defaults>
</compile_context>

<pallas_src>
import jax
import jax.numpy as jnp
from jax.experimental import pallas as pl
from jax.experimental.pallas import tpu as pltpu

EPS = 1e-5  # nn.GroupNorm default eps


def _block_kernel(x_ref, seg_ref,
                  wqkv_ref, bqkv_ref,      # fused + reordered QKV: rows = [k(C), v(C), q(1)]
                  wo_ref, bo_ref,
                  w1_ref, bm1_ref,
                  w2_ref, bm2_ref,
                  o_ref):
    """One grid step processes Bb batch elements.  x block: (Bb, C, PN)."""
    Bb, C, PN = x_ref.shape

    # Constants / weights: load once per grid step (hoisted out of the batch loop).
    seg = seg_ref[...]            # (PN, PN) bf16 block-diag ones: seg[i, j] = [i//N == j//N]
    wqkv = wqkv_ref[...]          # (2C+1, C)  bf16
    bqkv = bqkv_ref[...]          # (2C+1, 1)  f32
    wo = wo_ref[...]              # (C, C)     bf16
    bo = bo_ref[...]              # (C, 1)     f32
    w1 = w1_ref[...]              # (H, C)     bf16
    bm1 = bm1_ref[...]            # (H, 1)     f32
    w2 = w2_ref[...]              # (C, H)     bf16
    bm2 = bm2_ref[...]            # (C, 1)     f32

    for b in range(Bb):           # Bb is a small static constant
        x = x_ref[b]              # (C, PN) f32

        # ---- norm1: GroupNorm(num_groups=1); gamma/beta folded into Wqkv/bqkv ----
        mean1 = jnp.mean(x)
        var1 = jnp.mean(x * x) - mean1 * mean1
        xh = ((x - mean1) * jax.lax.rsqrt(var1 + EPS)).astype(jnp.bfloat16)

        # ---- fused QKV projection: one (2C+1, C) @ (C, PN) matmul ----
        qkv = jnp.dot(wqkv, xh, preferred_element_type=jnp.float32) + bqkv
        k = qkv[0:C]              # (C, PN)   (sublane-aligned slices: 0, C, 2C)
        v = qkv[C:2 * C]          # (C, PN)
        q = qkv[2 * C:2 * C + 1]  # (1, PN)

        # ---- linear self-attention: softmax over patches (N) within each pixel group ----
        # sum_n k * softmax(q) == (sum_n k * exp(q - qmax)) / (sum_n exp(q - qmax));
        # the per-group sum + broadcast is one matmul with the block-diagonal ones matrix.
        e = jnp.exp(q - jnp.max(q))                                        # (1, PN) f32
        ke = (k * e).astype(jnp.bfloat16)                                  # (C, PN)
        ksum = jnp.dot(ke, seg, preferred_element_type=jnp.float32)        # (C, PN)
        esum = jnp.dot(e.astype(jnp.bfloat16), seg,
                       preferred_element_type=jnp.float32)                 # (1, PN)
        cv = ksum / esum                                                   # exact divide
        a = (jnp.maximum(v, 0.0) * cv).astype(jnp.bfloat16)
        attn = jnp.dot(wo, a, preferred_element_type=jnp.float32) + bo
        y = x + attn              # residual uses the pre-norm input

        # ---- norm2; gamma/beta folded into W1/bm1 ----
        mean2 = jnp.mean(y)
        var2 = jnp.mean(y * y) - mean2 * mean2
        yh = ((y - mean2) * jax.lax.rsqrt(var2 + EPS)).astype(jnp.bfloat16)

        # ---- ConvMlp: 1x1 conv -> SiLU -> 1x1 conv, + residual ----
        h = jnp.dot(w1, yh, preferred_element_type=jnp.float32) + bm1
        h = h * pl.reciprocal(1.0 + jnp.exp(-h), approx=True)              # SiLU (EUP)
        m = jnp.dot(w2, h.astype(jnp.bfloat16),
                    preferred_element_type=jnp.float32) + bm2
        o_ref[b] = y + m


def _fold_params(params, C):
    """Fold GroupNorm affine params into adjacent 1x1 convs; reorder QKV rows to [k, v, q].

    Folding is done in f32; MXU operand weights are returned as bf16, biases stay f32.
    """
    f32, bf16 = jnp.float32, jnp.bfloat16
    col = lambda u: u.reshape(-1, 1).astype(f32)

    g1 = params["g1"].astype(f32); b1 = params["b1"].astype(f32)
    g2 = params["g2"].astype(f32); b2 = params["b2"].astype(f32)

    Wqkv0 = params["wqkv"].astype(f32)
    Wqkv = Wqkv0 * g1[None, :]
    bqkv = params["bqkv"].astype(f32) + Wqkv0 @ b1
    # reorder rows so in-kernel slices fall on sublane-aligned (multiple-of-8) offsets
    Wqkv_r = jnp.concatenate([Wqkv[1:1 + C], Wqkv[1 + C:1 + 2 * C], Wqkv[0:1]], axis=0)
    bqkv_r = jnp.concatenate([bqkv[1:1 + C], bqkv[1 + C:1 + 2 * C], bqkv[0:1]], axis=0)

    W10 = params["w1"].astype(f32)
    W1 = W10 * g2[None, :]
    bm1 = params["bm1"].astype(f32) + W10 @ b2

    return (Wqkv_r.astype(bf16), col(bqkv_r),
            params["wo"].astype(bf16), col(params["bo"]),
            W1.astype(bf16), col(bm1),
            params["w2"].astype(bf16), col(params["bm2"]))


def linear_transformer_block(x, params):
    """x: (B, C, P, N) float32 (PyTorch layout).  Returns the same shape."""
    B, C, P, N = x.shape
    PN = P * N
    H = params["w1"].shape[0]
    xf = x.reshape(B, C, PN).astype(jnp.float32)   # contiguous reshape, no HBM transpose

    # Two parallel steps when possible (fills both v7x TCs; near-free on v5e/v6e),
    # remaining batch elements blocked into each step to amortize per-step overhead.
    num_steps = 2 if (B % 2 == 0 and B >= 2) else 1
    Bb = B // num_steps

    # Block-diagonal ones matrix implementing the per-pixel-group sum over N + broadcast.
    idx = jnp.arange(PN, dtype=jnp.int32)
    seg = (idx[:, None] // N == idx[None, :] // N).astype(jnp.bfloat16)    # (PN, PN)

    wargs = _fold_params(params, C)
    consts = (seg,) + wargs

    def full_spec(a):
        nd = a.ndim
        return pl.BlockSpec(a.shape, lambda i, _nd=nd: (0,) * _nd)

    in_specs = [pl.BlockSpec((Bb, C, PN), lambda i: (i, 0, 0))]
    in_specs += [full_spec(a) for a in consts]

    flops = int(B * (2 * (2 * C + 1) * C * PN      # fused QKV projection
                     + 2 * (C + 1) * PN * PN       # block-diag segment sums
                     + 2 * C * C * PN              # out projection
                     + 4 * H * C * PN              # MLP (two 1x1 convs)
                     + 16 * C * PN))               # elementwise / norms (approx)
    transcendentals = int(B * (PN + H * PN))       # softmax exp + SiLU exp
    bytes_accessed = int(B * C * PN * 4 * 2
                         + sum(a.size * a.dtype.itemsize for a in consts))

    out = pl.pallas_call(
        _block_kernel,
        out_shape=jax.ShapeDtypeStruct((B, C, PN), jnp.float32),
        grid=(num_steps,),
        in_specs=in_specs,
        out_specs=pl.BlockSpec((Bb, C, PN), lambda i: (i, 0, 0)),
        compiler_params=pltpu.CompilerParams(
            dimension_semantics=("parallel",)),     # batch axis -> both TCs on v7x
        cost_estimate=pl.CostEstimate(flops=flops,
                                      transcendentals=transcendentals,
                                      bytes_accessed=bytes_accessed),
    )(xf, *consts)
    return out.reshape(B, C, P, N)


def init_params(key, C, H):
    ks = jax.random.split(key, 12)
    s = 0.1
    f32 = jnp.float32
    return dict(
        g1=(jnp.ones((C,), f32) + 0.1 * jax.random.normal(ks[0], (C,), f32)),
        b1=0.1 * jax.random.normal(ks[1], (C,), f32),
        wqkv=s * jax.random.normal(ks[2], (1 + 2 * C, C), f32),
        bqkv=s * jax.random.normal(ks[3], (1 + 2 * C,), f32),
        wo=s * jax.random.normal(ks[4], (C, C), f32),
        bo=s * jax.random.normal(ks[5], (C,), f32),
        g2=(jnp.ones((C,), f32) + 0.1 * jax.random.normal(ks[6], (C,), f32)),
        b2=0.1 * jax.random.normal(ks[7], (C,), f32),
        w1=s * jax.random.normal(ks[8], (H, C), f32),
        bm1=s * jax.random.normal(ks[9], (H,), f32),
        w2=s * jax.random.normal(ks[10], (C, H), f32),
        bm2=s * jax.random.normal(ks[11], (C,), f32),
    )


def ref_forward(x, params):
    """Pure-JAX reference matching the PyTorch module (eval mode, dropout=0)."""
    C = x.shape[1]

    def gn(t, g, b):
        mean = jnp.mean(t, axis=(1, 2, 3), keepdims=True)
        var = jnp.mean(jnp.square(t - mean), axis=(1, 2, 3), keepdims=True)
        return (t - mean) / jnp.sqrt(var + EPS) * g[None, :, None, None] + b[None, :, None, None]

    xn = gn(x, params["g1"], params["b1"])
    qkv = jnp.einsum("oc,bcpn->bopn", params["wqkv"], xn) + params["bqkv"][None, :, None, None]
    q, k, v = qkv[:, :1], qkv[:, 1:1 + C], qkv[:, 1 + C:]
    scores = jax.nn.softmax(q, axis=-1)
    cv = jnp.sum(k * scores, axis=-1, keepdims=True)
    a = jax.nn.relu(v) * cv
    attn = jnp.einsum("oc,bcpn->bopn", params["wo"], a) + params["bo"][None, :, None, None]
    x = x + attn
    yn = gn(x, params["g2"], params["b2"])
    h = jnp.einsum("hc,bcpn->bhpn", params["w1"], yn) + params["bm1"][None, :, None, None]
    h = h * jax.nn.sigmoid(h)
    m = jnp.einsum("ch,bhpn->bcpn", params["w2"], h) + params["bm2"][None, :, None, None]
    return x + m


if __name__ == "__main__":
    key = jax.random.PRNGKey(0)
    k_x, k_p = jax.random.split(key)

    B, C, P, N = 2, 32, 4, 64          # batch, embed_dim, pixels/patch, num patches
    mlp_ratio = 2.0
    H = int(C * mlp_ratio)

    params = init_params(k_p, C, H)
    x = jax.random.normal(k_x, (B, C, P, N), jnp.float32)

    out = jax.block_until_ready(linear_transformer_block(x, params))

    ref = ref_forward(x, params)
    assert out.shape == x.shape and out.dtype == jnp.float32
    max_err = float(jnp.max(jnp.abs(out - ref)))
    # tolerance accounts for bf16 MXU operands (~1e-2 relative drift) and the EUP
    # approximate reciprocal used for SiLU; softmax denominator now uses an exact divide.
    assert jnp.allclose(out, ref, atol=2e-2, rtol=2e-2), max_err

    print("KERNEL_OK")
</pallas_src>

<mosaic_0001>
module attributes {stable_mosaic.version = 11 : i64} {
  func.func @_block_kernel(%arg0: i32, %arg1: memref<1x32x256xf32, #tpu.memory_space<vmem>>, %arg2: memref<256x256xbf16, #tpu.memory_space<vmem>>, %arg3: memref<65x32xbf16, #tpu.memory_space<vmem>>, %arg4: memref<65x1xf32, #tpu.memory_space<vmem>>, %arg5: memref<32x32xbf16, #tpu.memory_space<vmem>>, %arg6: memref<32x1xf32, #tpu.memory_space<vmem>>, %arg7: memref<64x32xbf16, #tpu.memory_space<vmem>>, %arg8: memref<64x1xf32, #tpu.memory_space<vmem>>, %arg9: memref<32x64xbf16, #tpu.memory_space<vmem>>, %arg10: memref<32x1xf32, #tpu.memory_space<vmem>>, %arg11: memref<1x32x256xf32, #tpu.memory_space<vmem>>) attributes {dimension_semantics = [#tpu.dimension_semantics<parallel>], iteration_bounds = array<i64: 2>, scalar_prefetch = 0 : i64, scratch_operands = 0 : i64, tpu.core_type = #tpu.core_type<tc>, window_params = [{transform_indices = @transform_0, window_bounds = array<i64: 1, 32, 256>}, {pipeline_mode = #tpu.pipeline_mode<synchronous>, transform_indices = @transform_1, window_bounds = array<i64: 256, 256>}, {pipeline_mode = #tpu.pipeline_mode<synchronous>, transform_indices = @transform_2, window_bounds = array<i64: 65, 32>}, {pipeline_mode = #tpu.pipeline_mode<synchronous>, transform_indices = @transform_3, window_bounds = array<i64: 65, 1>}, {pipeline_mode = #tpu.pipeline_mode<synchronous>, transform_indices = @transform_4, window_bounds = array<i64: 32, 32>}, {pipeline_mode = #tpu.pipeline_mode<synchronous>, transform_indices = @transform_5, window_bounds = array<i64: 32, 1>}, {pipeline_mode = #tpu.pipeline_mode<synchronous>, transform_indices = @transform_6, window_bounds = array<i64: 64, 32>}, {pipeline_mode = #tpu.pipeline_mode<synchronous>, transform_indices = @transform_7, window_bounds = array<i64: 64, 1>}, {pipeline_mode = #tpu.pipeline_mode<synchronous>, transform_indices = @transform_8, window_bounds = array<i64: 32, 64>}, {pipeline_mode = #tpu.pipeline_mode<synchronous>, transform_indices = @transform_9, window_bounds = array<i64: 32, 1>}, {transform_indices = @transform_10, window_bounds = array<i64: 1, 32, 256>}]} {
    %c0 = arith.constant 0 : index
    %c0_0 = arith.constant 0 : index
    %0 = vector.load %arg2[%c0, %c0_0] : memref<256x256xbf16, #tpu.memory_space<vmem>>, vector<256x256xbf16>
    %c0_1 = arith.constant 0 : index
    %c0_2 = arith.constant 0 : index
    %1 = vector.load %arg3[%c0_1, %c0_2] : memref<65x32xbf16, #tpu.memory_space<vmem>>, vector<65x32xbf16>
    %c0_3 = arith.constant 0 : index
    %c0_4 = arith.constant 0 : index
    %2 = vector.load %arg4[%c0_3, %c0_4] : memref<65x1xf32, #tpu.memory_space<vmem>>, vector<65x1xf32>
    %c0_5 = arith.constant 0 : index
    %c0_6 = arith.constant 0 : index
    %3 = vector.load %arg5[%c0_5, %c0_6] : memref<32x32xbf16, #tpu.memory_space<vmem>>, vector<32x32xbf16>
    %c0_7 = arith.constant 0 : index
    %c0_8 = arith.constant 0 : index
    %4 = vector.load %arg6[%c0_7, %c0_8] : memref<32x1xf32, #tpu.memory_space<vmem>>, vector<32x1xf32>
    %c0_9 = arith.constant 0 : index
    %c0_10 = arith.constant 0 : index
    %5 = vector.load %arg7[%c0_9, %c0_10] : memref<64x32xbf16, #tpu.memory_space<vmem>>, vector<64x32xbf16>
    %c0_11 = arith.constant 0 : index
    %c0_12 = arith.constant 0 : index
    %6 = vector.load %arg8[%c0_11, %c0_12] : memref<64x1xf32, #tpu.memory_space<vmem>>, vector<64x1xf32>
    %c0_13 = arith.constant 0 : index
    %c0_14 = arith.constant 0 : index
    %7 = vector.load %arg9[%c0_13, %c0_14] : memref<32x64xbf16, #tpu.memory_space<vmem>>, vector<32x64xbf16>
    %c0_15 = arith.constant 0 : index
    %c0_16 = arith.constant 0 : index
    %8 = vector.load %arg10[%c0_15, %c0_16] : memref<32x1xf32, #tpu.memory_space<vmem>>, vector<32x1xf32>
    %c0_17 = arith.constant 0 : index
    %c0_18 = arith.constant 0 : index
    %c0_19 = arith.constant 0 : index
    %9 = vector.load %arg1[%c0_17, %c0_18, %c0_19] : memref<1x32x256xf32, #tpu.memory_space<vmem>>, vector<1x32x256xf32>
    %10 = vector.shape_cast %9 : vector<1x32x256xf32> to vector<32x256xf32>
    %11 = vector.shape_cast %10 : vector<32x256xf32> to vector<1x32x256xf32>
    %cst = arith.constant dense<0.000000e+00> : vector<1xf32>
    %12 = vector.multi_reduction <add>, %11, %cst [1, 2] : vector<1x32x256xf32> to vector<1xf32>
    %13 = vector.shape_cast %12 : vector<1xf32> to vector<1x1x1xf32>
    %14 = vector.extract %13[0, 0, 0] : f32 from vector<1x1x1xf32>
    %cst_20 = arith.constant 8.192000e+03 : f32
    %15 = arith.divf %14, %cst_20 : f32
    %16 = arith.mulf %10, %10 : vector<32x256xf32>
    %17 = vector.shape_cast %16 : vector<32x256xf32> to vector<1x32x256xf32>
    %cst_21 = arith.constant dense<0.000000e+00> : vector<1xf32>
    %18 = vector.multi_reduction <add>, %17, %cst_21 [1, 2] : vector<1x32x256xf32> to vector<1xf32>
    %19 = vector.shape_cast %18 : vector<1xf32> to vector<1x1x1xf32>
    %20 = vector.extract %19[0, 0, 0] : f32 from vector<1x1x1xf32>
    %cst_22 = arith.constant 8.192000e+03 : f32
    %21 = arith.divf %20, %cst_22 : f32
    %22 = arith.mulf %15, %15 : f32
    %23 = arith.subf %21, %22 : f32
    %24 = vector.broadcast %15 : f32 to vector<32x256xf32>
    %25 = arith.subf %10, %24 : vector<32x256xf32>
    %cst_23 = arith.constant 9.99999974E-6 : f32
    %26 = arith.addf %23, %cst_23 : f32
    %27 = math.rsqrt %26 : f32
    %28 = vector.broadcast %27 : f32 to vector<32x256xf32>
    %29 = arith.mulf %25, %28 : vector<32x256xf32>
    %30 = arith.truncf %29 : vector<32x256xf32> to vector<32x256xbf16>
    %cst_24 = arith.constant dense<0.000000e+00> : vector<65x256xf32>
    %31 = tpu.matmul %1, %30, %cst_24 {dimension_numbers = #tpu.dot_dimension_numbers<[1], [0], [0], [1], [0, 0, 1, 1], [], []>} : vector<65x32xbf16>, vector<32x256xbf16>, vector<65x256xf32> -> vector<65x256xf32>
    %32 = vector.broadcast %2 : vector<65x1xf32> to vector<65x256xf32>
    %33 = arith.addf %31, %32 : vector<65x256xf32>
    %34 = vector.extract_strided_slice %33 {offsets = [0, 0], sizes = [32, 256], strides = [1, 1]} : vector<65x256xf32> to vector<32x256xf32>
    %35 = vector.extract_strided_slice %33 {offsets = [32, 0], sizes = [32, 256], strides = [1, 1]} : vector<65x256xf32> to vector<32x256xf32>
    %36 = vector.extract_strided_slice %33 {offsets = [64, 0], sizes = [1, 256], strides = [1, 1]} : vector<65x256xf32> to vector<1x256xf32>
    %37 = vector.shape_cast %36 : vector<1x256xf32> to vector<1x1x256xf32>
    %cst_25 = arith.constant dense<0xFF800000> : vector<1xf32>
    %38 = vector.multi_reduction <maximumf>, %37, %cst_25 [1, 2] : vector<1x1x256xf32> to vector<1xf32>
    %39 = vector.shape_cast %38 : vector<1xf32> to vector<1x1x1xf32>
    %40 = vector.extract %39[0, 0, 0] : f32 from vector<1x1x1xf32>
    %41 = vector.broadcast %40 : f32 to vector<1x256xf32>
    %42 = arith.subf %36, %41 : vector<1x256xf32>
    %43 = math.exp %42 : vector<1x256xf32>
    %44 = vector.broadcast %43 : vector<1x256xf32> to vector<32x256xf32>
    %45 = arith.mulf %34, %44 : vector<32x256xf32>
    %46 = arith.truncf %45 : vector<32x256xf32> to vector<32x256xbf16>
    %cst_26 = arith.constant dense<0.000000e+00> : vector<32x256xf32>
    %47 = tpu.matmul %46, %0, %cst_26 {dimension_numbers = #tpu.dot_dimension_numbers<[1], [0], [0], [1], [0, 0, 1, 1], [], []>} : vector<32x256xbf16>, vector<256x256xbf16>, vector<32x256xf32> -> vector<32x256xf32>
    %48 = arith.truncf %43 : vector<1x256xf32> to vector<1x256xbf16>
    %cst_27 = arith.constant dense<0.000000e+00> : vector<1x256xf32>
    %49 = tpu.matmul %48, %0, %cst_27 {dimension_numbers = #tpu.dot_dimension_numbers<[1], [0], [0], [1], [0, 0, 1, 1], [], []>} : vector<1x256xbf16>, vector<256x256xbf16>, vector<1x256xf32> -> vector<1x256xf32>
    %50 = vector.broadcast %49 : vector<1x256xf32> to vector<32x256xf32>
    %51 = arith.divf %47, %50 : vector<32x256xf32>
    %cst_28 = arith.constant 0.000000e+00 : f32
    %52 = vector.broadcast %cst_28 : f32 to vector<32x256xf32>
    %53 = arith.maximumf %35, %52 : vector<32x256xf32>
    %54 = arith.mulf %53, %51 : vector<32x256xf32>
    %55 = arith.truncf %54 : vector<32x256xf32> to vector<32x256xbf16>
    %cst_29 = arith.constant dense<0.000000e+00> : vector<32x256xf32>
    %56 = tpu.matmul %3, %55, %cst_29 {dimension_numbers = #tpu.dot_dimension_numbers<[1], [0], [0], [1], [0, 0, 1, 1], [], []>} : vector<32x32xbf16>, vector<32x256xbf16>, vector<32x256xf32> -> vector<32x256xf32>
    %57 = vector.broadcast %4 : vector<32x1xf32> to vector<32x256xf32>
    %58 = arith.addf %56, %57 : vector<32x256xf32>
    %59 = arith.addf %10, %58 : vector<32x256xf32>
    %60 = vector.shape_cast %59 : vector<32x256xf32> to vector<1x32x256xf32>
    %cst_30 = arith.constant dense<0.000000e+00> : vector<1xf32>
    %61 = vector.multi_reduction <add>, %60, %cst_30 [1, 2] : vector<1x32x256xf32> to vector<1xf32>
    %62 = vector.shape_cast %61 : vector<1xf32> to vector<1x1x1xf32>
    %63 = vector.extract %62[0, 0, 0] : f32 from vector<1x1x1xf32>
    %cst_31 = arith.constant 8.192000e+03 : f32
    %64 = arith.divf %63, %cst_31 : f32
    %65 = arith.mulf %59, %59 : vector<32x256xf32>
    %66 = vector.shape_cast %65 : vector<32x256xf32> to vector<1x32x256xf32>
    %cst_32 = arith.constant dense<0.000000e+00> : vector<1xf32>
    %67 = vector.multi_reduction <add>, %66, %cst_32 [1, 2] : vector<1x32x256xf32> to vector<1xf32>
    %68 = vector.shape_cast %67 : vector<1xf32> to vector<1x1x1xf32>
    %69 = vector.extract %68[0, 0, 0] : f32 from vector<1x1x1xf32>
    %cst_33 = arith.constant 8.192000e+03 : f32
    %70 = arith.divf %69, %cst_33 : f32
    %71 = arith.mulf %64, %64 : f32
    %72 = arith.subf %70, %71 : f32
    %73 = vector.broadcast %64 : f32 to vector<32x256xf32>
    %74 = arith.subf %59, %73 : vector<32x256xf32>
    %cst_34 = arith.constant 9.99999974E-6 : f32
    %75 = arith.addf %72, %cst_34 : f32
    %76 = math.rsqrt %75 : f32
    %77 = vector.broadcast %76 : f32 to vector<32x256xf32>
    %78 = arith.mulf %74, %77 : vector<32x256xf32>
    %79 = arith.truncf %78 : vector<32x256xf32> to vector<32x256xbf16>
    %cst_35 = arith.constant dense<0.000000e+00> : vector<64x256xf32>
    %80 = tpu.matmul %5, %79, %cst_35 {dimension_numbers = #tpu.dot_dimension_numbers<[1], [0], [0], [1], [0, 0, 1, 1], [], []>} : vector<64x32xbf16>, vector<32x256xbf16>, vector<64x256xf32> -> vector<64x256xf32>
    %81 = vector.broadcast %6 : vector<64x1xf32> to vector<64x256xf32>
    %82 = arith.addf %80, %81 : vector<64x256xf32>
    %cst_36 = arith.constant 0.000000e+00 : f32
    %83 = vector.broadcast %cst_36 : f32 to vector<64x256xf32>
    %84 = arith.subf %83, %82 : vector<64x256xf32>
    %85 = math.exp %84 : vector<64x256xf32>
    %cst_37 = arith.constant 1.000000e+00 : f32
    %86 = vector.broadcast %cst_37 : f32 to vector<64x256xf32>
    %87 = arith.addf %86, %85 : vector<64x256xf32>
    %88 = tpu.reciprocal %87 {approx = true} : vector<64x256xf32> -> vector<64x256xf32>
    %89 = arith.mulf %82, %88 : vector<64x256xf32>
    %90 = arith.truncf %89 : vector<64x256xf32> to vector<64x256xbf16>
    %cst_38 = arith.constant dense<0.000000e+00> : vector<32x256xf32>
    %91 = tpu.matmul %7, %90, %cst_38 {dimension_numbers = #tpu.dot_dimension_numbers<[1], [0], [0], [1], [0, 0, 1, 1], [], []>} : vector<32x64xbf16>, vector<64x256xbf16>, vector<32x256xf32> -> vector<32x256xf32>
    %92 = vector.broadcast %8 : vector<32x1xf32> to vector<32x256xf32>
    %93 = arith.addf %91, %92 : vector<32x256xf32>
    %94 = arith.addf %59, %93 : vector<32x256xf32>
    %c0_39 = arith.constant 0 : index
    %c0_40 = arith.constant 0 : index
    %c0_41 = arith.constant 0 : index
    %95 = vector.load %arg11[%c0_39, %c0_40, %c0_41] : memref<1x32x256xf32, #tpu.memory_space<vmem>>, vector<1x32x256xf32>
    %96 = vector.shape_cast %95 : vector<1x32x256xf32> to vector<32x256xf32>
    %97 = vector.shape_cast %94 : vector<32x256xf32> to vector<1x32x256xf32>
    tpu.vector_store %arg11[%c0_39, %c0_40, %c0_41], %97 {strides = array<i32>} : memref<1x32x256xf32, #tpu.memory_space<vmem>>, vector<1x32x256xf32>,
    return
  }
  func.func @transform_0(%arg0: i32) -> (i32, i32, i32) {
    %c0_i32 = arith.constant 0 : i32
    %c0_i32_0 = arith.constant 0 : i32
    %c0_i32_1 = arith.constant 0 : i32
    return %arg0, %c0_i32, %c0_i32_0 : i32, i32, i32
  }
  func.func @transform_1(%arg0: i32) -> (i32, i32) {
    %c0_i32 = arith.constant 0 : i32
    %c0_i32_0 = arith.constant 0 : i32
    %c0_i32_1 = arith.constant 0 : i32
    return %c0_i32, %c0_i32_0 : i32, i32
  }
  func.func @transform_2(%arg0: i32) -> (i32, i32) {
    %c0_i32 = arith.constant 0 : i32
    %c0_i32_0 = arith.constant 0 : i32
    %c0_i32_1 = arith.constant 0 : i32
    return %c0_i32, %c0_i32_0 : i32, i32
  }
  func.func @transform_3(%arg0: i32) -> (i32, i32) {
    %c0_i32 = arith.constant 0 : i32
    %c0_i32_0 = arith.constant 0 : i32
    %c0_i32_1 = arith.constant 0 : i32
    return %c0_i32, %c0_i32_0 : i32, i32
  }
  func.func @transform_4(%arg0: i32) -> (i32, i32) {
    %c0_i32 = arith.constant 0 : i32
    %c0_i32_0 = arith.constant 0 : i32
    %c0_i32_1 = arith.constant 0 : i32
    return %c0_i32, %c0_i32_0 : i32, i32
  }
  func.func @transform_5(%arg0: i32) -> (i32, i32) {
    %c0_i32 = arith.constant 0 : i32
    %c0_i32_0 = arith.constant 0 : i32
    %c0_i32_1 = arith.constant 0 : i32
    return %c0_i32, %c0_i32_0 : i32, i32
  }
  func.func @transform_6(%arg0: i32) -> (i32, i32) {
    %c0_i32 = arith.constant 0 : i32
    %c0_i32_0 = arith.constant 0 : i32
    %c0_i32_1 = arith.constant 0 : i32
    return %c0_i32, %c0_i32_0 : i32, i32
  }
  func.func @transform_7(%arg0: i32) -> (i32, i32) {
    %c0_i32 = arith.constant 0 : i32
    %c0_i32_0 = arith.constant 0 : i32
    %c0_i32_1 = arith.constant 0 : i32
    return %c0_i32, %c0_i32_0 : i32, i32
  }
  func.func @transform_8(%arg0: i32) -> (i32, i32) {
    %c0_i32 = arith.constant 0 : i32
    %c0_i32_0 = arith.constant 0 : i32
    %c0_i32_1 = arith.constant 0 : i32
    return %c0_i32, %c0_i32_0 : i32, i32
  }
  func.func @transform_9(%arg0: i32) -> (i32, i32) {
    %c0_i32 = arith.constant 0 : i32
    %c0_i32_0 = arith.constant 0 : i32
    %c0_i32_1 = arith.constant 0 : i32
    return %c0_i32, %c0_i32_0 : i32, i32
  }
  func.func @transform_10(%arg0: i32) -> (i32, i32, i32) {
    %c0_i32 = arith.constant 0 : i32
    %c0_i32_0 = arith.constant 0 : i32
    %c0_i32_1 = arith.constant 0 : i32
    return %arg0, %c0_i32, %c0_i32_0 : i32, i32, i32
  }
}

</mosaic_0001>

<llo_original>
// kernel: tpu_custom_call.1
$region0: #{tpu_custom_call.1}
  #allocation0 [shape = 'u32[]', space=smem, size = 0x4, offset = 0x4, fixed_abs, tag = 'smem constant byte address 0x4 - core index']
  #allocation1 [shape = 'u32[144,128]{1,0:T(1,128)}', space=vmem, size = 0x12000, scoped, tag = 'internal scratch']
  %s0 = inlined_call_operand.hbm [shape: f32[2,32,256], index: 0, kind: input, shape index: {}]
  %s1 = inlined_call_operand.vmem [shape: bf16[256,256], index: 1, kind: input, shape index: {}]
  %s2 = inlined_call_operand.vmem [shape: bf16[65,32], index: 2, kind: input, shape index: {}]
  %s3 = inlined_call_operand.vmem [shape: f32[65,1], index: 3, kind: input, shape index: {}]
  %s4 = inlined_call_operand.vmem [shape: bf16[32,32], index: 4, kind: input, shape index: {}]
  %s5 = inlined_call_operand.vmem [shape: f32[32,1], index: 5, kind: input, shape index: {}]
  %s6 = inlined_call_operand.vmem [shape: bf16[64,32], index: 6, kind: input, shape index: {}]
  %s7 = inlined_call_operand.vmem [shape: f32[64,1], index: 7, kind: input, shape index: {}]
  %s8 = inlined_call_operand.vmem [shape: bf16[32,64], index: 8, kind: input, shape index: {}]
  %s9 = inlined_call_operand.vmem [shape: f32[32,1], index: 9, kind: input, shape index: {}]
  %s10 = inlined_call_operand.hbm [shape: f32[2,32,256], index: 10, kind: output, shape index: {}]
  %s11 = sld [smem:[#allocation0]]
  $region77: #{tpu_custom_call.1} parent=0
    _
  %s13 = ssub.s32 1, %s11
  %s14 = scalar_select 0, %s13, %s11
  $region1: #{tpu_custom_call.1} parent=0
    #allocation2 [shape = 'u8[65536]{0}', space=vmem, size = 0x10000, scoped, tag = 'input window, operand 0']
    #allocation3 [shape = 's32[2]{0}', space=sflag, size = 0x8, scoped, tag = 'scoped memory for tpu_custom_call.1']
    #allocation4 [shape = 's32[2]{0}', space=sflag, size = 0x8, scoped, tag = 'scoped memory for tpu_custom_call.1']
    #allocation5 [shape = 'u8[65536]{0}', space=vmem, size = 0x10000, scoped, tag = 'output window, operand 0']
    %15 = vsyncpa [#allocation3], 0
    %s16 = scalar_lea.sflag [#allocation3], 1
    %17 = vsyncpa %s16, 0
    %18 = vsyncpa [#allocation4], 0
    %s19 = scalar_lea.sflag [#allocation4], 1
    %20 = vsyncpa %s19, 0
    loop: start=0, step=1, limit=4
    $region2: #{tpu_custom_call.1} parent=1 // loop_pre_header
      _
    $region3: #{tpu_custom_call.1} parent=1 // loop_header
      %s22 = sphi 0, %s26
      %p23 = scmp.ge.s32.totalorder %s22, 4
      %s32 = sphi 0, %s34
      %s35 = sphi 0, %s32
      %s36 = sphi 0, %s35
      %s52 = sphi 0, %s36
      %s56 = sphi 0, %s56
      %s58 = sphi 0, %s56
      %s59 = sphi 0, %s58
      %s73 = sphi 0, %s59
      %s77 = sphi 0, %s77
      %s79 = sphi 0, %s77
      %s80 = sphi 0, %s79
      %s94 = sphi 0, %s80
      %s98 = sphi 0, %s98
      %s100 = sphi 0, %s98
      %s101 = sphi 0, %s100
      %s115 = sphi 0, %s101
      %s119 = sphi 0, %s119
      %s121 = sphi 0, %s119
      %s122 = sphi 0, %s121
      %s136 = sphi 0, %s122
      %s140 = sphi 0, %s140
      %s142 = sphi 0, %s140
      %s143 = sphi 0, %s142
      %s157 = sphi 0, %s143
      %s161 = sphi 0, %s161
      %s163 = sphi 0, %s161
      %s164 = sphi 0, %s163
      %s178 = sphi 0, %s164
      %s182 = sphi 0, %s182
      %s184 = sphi 0, %s182
      %s185 = sphi 0, %s184
      %s199 = sphi 0, %s185
      %s203 = sphi 0, %s203
      %s205 = sphi 0, %s203
      %s206 = sphi 0, %s205
      %s220 = sphi 0, %s206
      %s224 = sphi 0, %s224
      %s226 = sphi 0, %s224
      %s227 = sphi 0, %s226
      %s241 = sphi 0, %s227
      %s247 = sphi 0, %s249
      %s250 = sphi 0, %s247
      %s251 = sphi 0, %s250
      %s267 = sphi 0, %s251
    $region4: #{tpu_custom_call.1} parent=1 // loop_header_branch
      %25 = sbr.rel (%p23) target = $region8
    $region5: #{tpu_custom_call.1} parent=1 // loop_body
      %s27 = ssub.s32 %s22, 1
      %s28 = ssub.s32 %s22, 2
      %s29 = sadd.s32 %s22, 1
      %s30 = ssub.s32 %s22, %s29
      %p31 = scmp.eq.s32.totalorder %s30, 0
      %s33 = sadd.s32 %s32, 1
      %s34 = scalar_select %p31, %s32, %s33
      %p37 = pneg %p31
      %p38 = scmp.eq.s32.totalorder %s22, 1
      %p39 = por %p37, %p38
      %p40 = scmp.ne.s32.totalorder %s32, %s35
      %p41 = scmp.eq.s32.totalorder %s22, 0
      %p42 = por %p40, %p41
      %p43 = scmp.ne.s32.totalorder %s32, %s35
      %p44 = scmp.eq.s32.totalorder %s27, 1
      %p45 = por %p43, %p44
      %p46 = scmp.ne.s32.totalorder %s35, %s36
      %p47 = scmp.eq.s32.totalorder %s27, 0
      %p48 = por %p46, %p47
      %p49 = scmp.ne.s32.totalorder %s35, %s36
      %p50 = scmp.eq.s32.totalorder %s28, 1
      %p51 = por %p49, %p50
      %p53 = scmp.ne.s32.totalorder %s36, %s52
      %p54 = scmp.eq.s32.totalorder %s28, 0
      %p55 = por %p53, %p54
      %s57 = sadd.s32 %s56, 1
      %p60 = scmp.eq.s32.totalorder %s22, 1
      %p61 = scmp.ne.s32.totalorder %s56, %s58
      %p62 = scmp.eq.s32.totalorder %s22, 0
      %p63 = por %p61, %p62
      %p64 = scmp.ne.s32.totalorder %s56, %s58
      %p65 = scmp.eq.s32.totalorder %s27, 1
      %p66 = por %p64, %p65
      %p67 = scmp.ne.s32.totalorder %s58, %s59
      %p68 = scmp.eq.s32.totalorder %s27, 0
      %p69 = por %p67, %p68
      %p70 = scmp.ne.s32.totalorder %s58, %s59
      %p71 = scmp.eq.s32.totalorder %s28, 1
      %p72 = por %p70, %p71
      %p74 = scmp.ne.s32.totalorder %s59, %s73
      %p75 = scmp.eq.s32.totalorder %s28, 0
      %p76 = por %p74, %p75
      %s78 = sadd.s32 %s77, 1
      %p81 = scmp.eq.s32.totalorder %s22, 1
      %p82 = scmp.ne.s32.totalorder %s77, %s79
      %p83 = scmp.eq.s32.totalorder %s22, 0
      %p84 = por %p82, %p83
      %p85 = scmp.ne.s32.totalorder %s77, %s79
      %p86 = scmp.eq.s32.totalorder %s27, 1
      %p87 = por %p85, %p86
      %p88 = scmp.ne.s32.totalorder %s79, %s80
      %p89 = scmp.eq.s32.totalorder %s27, 0
      %p90 = por %p88, %p89
      %p91 = scmp.ne.s32.totalorder %s79, %s80
      %p92 = scmp.eq.s32.totalorder %s28, 1
      %p93 = por %p91, %p92
      %p95 = scmp.ne.s32.totalorder %s80, %s94
      %p96 = scmp.eq.s32.totalorder %s28, 0
      %p97 = por %p95, %p96
      %s99 = sadd.s32 %s98, 1
      %p102 = scmp.eq.s32.totalorder %s22, 1
      %p103 = scmp.ne.s32.totalorder %s98, %s100
      %p104 = scmp.eq.s32.totalorder %s22, 0
      %p105 = por %p103, %p104
      %p106 = scmp.ne.s32.totalorder %s98, %s100
      %p107 = scmp.eq.s32.totalorder %s27, 1
      %p108 = por %p106, %p107
      %p109 = scmp.ne.s32.totalorder %s100, %s101
      %p110 = scmp.eq.s32.totalorder %s27, 0
      %p111 = por %p109, %p110
      %p112 = scmp.ne.s32.totalorder %s100, %s101
      %p113 = scmp.eq.s32.totalorder %s28, 1
      %p114 = por %p112, %p113
      %p116 = scmp.ne.s32.totalorder %s101, %s115
      %p117 = scmp.eq.s32.totalorder %s28, 0
      %p118 = por %p116, %p117
      %s120 = sadd.s32 %s119, 1
      %p123 = scmp.eq.s32.totalorder %s22, 1
      %p124 = scmp.ne.s32.totalorder %s119, %s121
      %p125 = scmp.eq.s32.totalorder %s22, 0
      %p126 = por %p124, %p125
      %p127 = scmp.ne.s32.totalorder %s119, %s121
      %p128 = scmp.eq.s32.totalorder %s27, 1
      %p129 = por %p127, %p128
      %p130 = scmp.ne.s32.totalorder %s121, %s122
      %p131 = scmp.eq.s32.totalorder %s27, 0
      %p132 = por %p130, %p131
      %p133 = scmp.ne.s32.totalorder %s121, %s122
      %p134 = scmp.eq.s32.totalorder %s28, 1
      %p135 = por %p133, %p134
      %p137 = scmp.ne.s32.totalorder %s122, %s136
      %p138 = scmp.eq.s32.totalorder %s28, 0
      %p139 = por %p137, %p138
      %s141 = sadd.s32 %s140, 1
      %p144 = scmp.eq.s32.totalorder %s22, 1
      %p145 = scmp.ne.s32.totalorder %s140, %s142
      %p146 = scmp.eq.s32.totalorder %s22, 0
      %p147 = por %p145, %p146
      %p148 = scmp.ne.s32.totalorder %s140, %s142
      %p149 = scmp.eq.s32.totalorder %s27, 1
      %p150 = por %p148, %p149
      %p151 = scmp.ne.s32.totalorder %s142, %s143
      %p152 = scmp.eq.s32.totalorder %s27, 0
      %p153 = por %p151, %p152
      %p154 = scmp.ne.s32.totalorder %s142, %s143
      %p155 = scmp.eq.s32.totalorder %s28, 1
      %p156 = por %p154, %p155
      %p158 = scmp.ne.s32.totalorder %s143, %s157
      %p159 = scmp.eq.s32.totalorder %s28, 0
      %p160 = por %p158, %p159
      %s162 = sadd.s32 %s161, 1
      %p165 = scmp.eq.s32.totalorder %s22, 1
      %p166 = scmp.ne.s32.totalorder %s161, %s163
      %p167 = scmp.eq.s32.totalorder %s22, 0
      %p168 = por %p166, %p167
      %p169 = scmp.ne.s32.totalorder %s161, %s163
      %p170 = scmp.eq.s32.totalorder %s27, 1
      %p171 = por %p169, %p170
      %p172 = scmp.ne.s32.totalorder %s163, %s164
      %p173 = scmp.eq.s32.totalorder %s27, 0
      %p174 = por %p172, %p173
      %p175 = scmp.ne.s32.totalorder %s163, %s164
      %p176 = scmp.eq.s32.totalorder %s28, 1
      %p177 = por %p175, %p176
      %p179 = scmp.ne.s32.totalorder %s164, %s178
      %p180 = scmp.eq.s32.totalorder %s28, 0
      %p181 = por %p179, %p180
      %s183 = sadd.s32 %s182, 1
      %p186 = scmp.eq.s32.totalorder %s22, 1
      %p187 = scmp.ne.s32.totalorder %s182, %s184
      %p188 = scmp.eq.s32.totalorder %s22, 0
      %p189 = por %p187, %p188
      %p190 = scmp.ne.s32.totalorder %s182, %s184
      %p191 = scmp.eq.s32.totalorder %s27, 1
      %p192 = por %p190, %p191
      %p193 = scmp.ne.s32.totalorder %s184, %s185
      %p194 = scmp.eq.s32.totalorder %s27, 0
      %p195 = por %p193, %p194
      %p196 = scmp.ne.s32.totalorder %s184, %s185
      %p197 = scmp.eq.s32.totalorder %s28, 1
      %p198 = por %p196, %p197
      %p200 = scmp.ne.s32.totalorder %s185, %s199
      %p201 = scmp.eq.s32.totalorder %s28, 0
      %p202 = por %p200, %p201
      %s204 = sadd.s32 %s203, 1
      %p207 = scmp.eq.s32.totalorder %s22, 1
      %p208 = scmp.ne.s32.totalorder %s203, %s205
      %p209 = scmp.eq.s32.totalorder %s22, 0
      %p210 = por %p208, %p209
      %p211 = scmp.ne.s32.totalorder %s203, %s205
      %p212 = scmp.eq.s32.totalorder %s27, 1
      %p213 = por %p211, %p212
      %p214 = scmp.ne.s32.totalorder %s205, %s206
      %p215 = scmp.eq.s32.totalorder %s27, 0
      %p216 = por %p214, %p215
      %p217 = scmp.ne.s32.totalorder %s205, %s206
      %p218 = scmp.eq.s32.totalorder %s28, 1
      %p219 = por %p217, %p218
      %p221 = scmp.ne.s32.totalorder %s206, %s220
      %p222 = scmp.eq.s32.totalorder %s28, 0
      %p223 = por %p221, %p222
      %s225 = sadd.s32 %s224, 1
      %p228 = scmp.eq.s32.totalorder %s22, 1
      %p229 = scmp.ne.s32.totalorder %s224, %s226
      %p230 = scmp.eq.s32.totalorder %s22, 0
      %p231 = por %p229, %p230
      %p232 = scmp.ne.s32.totalorder %s224, %s226
      %p233 = scmp.eq.s32.totalorder %s27, 1
      %p234 = por %p232, %p233
      %p235 = scmp.ne.s32.totalorder %s226, %s227
      %p236 = scmp.eq.s32.totalorder %s27, 0
      %p237 = por %p235, %p236
      %p238 = scmp.ne.s32.totalorder %s226, %s227
      %p239 = scmp.eq.s32.totalorder %s28, 1
      %p240 = por %p238, %p239
      %p242 = scmp.ne.s32.totalorder %s227, %s241
      %p243 = scmp.eq.s32.totalorder %s28, 0
      %p244 = por %p242, %p243
      %s245 = ssub.s32 %s22, %s29
      %p246 = scmp.eq.s32.totalorder %s245, 0
      %s248 = sadd.s32 %s247, 1
      %s249 = scalar_select %p246, %s247, %s248
      %p252 = pneg %p246
      %p253 = scmp.eq.s32.totalorder %s22, 1
      %p254 = por %p252, %p253
      %p255 = scmp.ne.s32.totalorder %s247, %s250
      %p256 = scmp.eq.s32.totalorder %s22, 0
      %p257 = por %p255, %p256
      %p258 = scmp.ne.s32.totalorder %s247, %s250
      %p259 = scmp.eq.s32.totalorder %s27, 1
      %p260 = por %p258, %p259
      %p261 = scmp.ne.s32.totalorder %s250, %s251
      %p262 = scmp.eq.s32.totalorder %s27, 0
      %p263 = por %p261, %p262
      %p264 = scmp.ne.s32.totalorder %s250, %s251
      %p265 = scmp.eq.s32.totalorder %s28, 1
      %p266 = por %p264, %p265
      %p268 = scmp.ne.s32.totalorder %s251, %s267
      %p269 = scmp.eq.s32.totalorder %s28, 0
      %p270 = por %p268, %p269
      %p271 = scmp.le.s32.totalorder 1, %s22
      %p272 = scmp.lt.s32.totalorder %s22, 3
      %p273 = pnand %p271, %p272
      %p274 = pneg %p273
      // Predicated region
      $region9: #{tpu_custom_call.1} parent=5 // pred_check
        _
      $region10: #{tpu_custom_call.1} parent=5 // pred_check_branch
        %276 = sbr.rel (%p273) target = $region12
      $region11: #{tpu_custom_call.1} parent=5 // pred_region
        %s277 = ssub.s32 %s22, 1
        // Predicated region
        $region13: #{tpu_custom_call.1} parent=11 // pred_check
          %p278 = pneg %p69
        $region14: #{tpu_custom_call.1} parent=11 // pred_check_branch
          %280 = sbr.rel (%p278) target = $region16
        $region15: #{tpu_custom_call.1} parent=11 // pred_region
          _
        $region16: #{tpu_custom_call.1} parent=11 // pred_fallthru
          _
        // Predicated region
        $region17: #{tpu_custom_call.1} parent=11 // pred_check
          %p281 = pneg %p90
        $region18: #{tpu_custom_call.1} parent=11 // pred_check_branch
          %283 = sbr.rel (%p281) target = $region20
        $region19: #{tpu_custom_call.1} parent=11 // pred_region
          _
        $region20: #{tpu_custom_call.1} parent=11 // pred_fallthru
          _
        // Predicated region
        $region21: #{tpu_custom_call.1} parent=11 // pred_check
          %p284 = pneg %p111
        $region22: #{tpu_custom_call.1} parent=11 // pred_check_branch
          %286 = sbr.rel (%p284) target = $region24
        $region23: #{tpu_custom_call.1} parent=11 // pred_region
          _
        $region24: #{tpu_custom_call.1} parent=11 // pred_fallthru
          _
        // Predicated region
        $region25: #{tpu_custom_call.1} parent=11 // pred_check
          %p287 = pneg %p132
        $region26: #{tpu_custom_call.1} parent=11 // pred_check_branch
          %289 = sbr.rel (%p287) target = $region28
        $region27: #{tpu_custom_call.1} parent=11 // pred_region
          _
        $region28: #{tpu_custom_call.1} parent=11 // pred_fallthru
          _
        // Predicated region
        $region29: #{tpu_custom_call.1} parent=11 // pred_check
          %p290 = pneg %p153
        $region30: #{tpu_custom_call.1} parent=11 // pred_check_branch
          %292 = sbr.rel (%p290) target = $region32
        $region31: #{tpu_custom_call.1} parent=11 // pred_region
          _
        $region32: #{tpu_custom_call.1} parent=11 // pred_fallthru
          _
        // Predicated region
        $region33: #{tpu_custom_call.1} parent=11 // pred_check
          %p293 = pneg %p174
        $region34: #{tpu_custom_call.1} parent=11 // pred_check_branch
          %295 = sbr.rel (%p293) target = $region36
        $region35: #{tpu_custom_call.1} parent=11 // pred_region
          _
        $region36: #{tpu_custom_call.1} parent=11 // pred_fallthru
          _
        // Predicated region
        $region37: #{tpu_custom_call.1} parent=11 // pred_check
          %p296 = pneg %p195
        $region38: #{tpu_custom_call.1} parent=11 // pred_check_branch
          %298 = sbr.rel (%p296) target = $region40
        $region39: #{tpu_custom_call.1} parent=11 // pred_region
          _
        $region40: #{tpu_custom_call.1} parent=11 // pred_fallthru
          _
        // Predicated region
        $region41: #{tpu_custom_call.1} parent=11 // pred_check
          %p299 = pneg %p216
        $region42: #{tpu_custom_call.1} parent=11 // pred_check_branch
          %301 = sbr.rel (%p299) target = $region44
        $region43: #{tpu_custom_call.1} parent=11 // pred_region
          _
        $region44: #{tpu_custom_call.1} parent=11 // pred_fallthru
          _
        // Predicated region
        $region45: #{tpu_custom_call.1} parent=11 // pred_check
          %p302 = pneg %p237
        $region46: #{tpu_custom_call.1} parent=11 // pred_check_branch
          %304 = sbr.rel (%p302) target = $region48
        $region47: #{tpu_custom_call.1} parent=11 // pred_region
          _
        $region48: #{tpu_custom_call.1} parent=11 // pred_fallthru
          _
      $region12: #{tpu_custom_call.1} parent=5 // pred_fallthru
        _
      %p305 = scmp.lt.s32.totalorder %s22, 2
      // Predicated region
      $region49: #{tpu_custom_call.1} parent=5 // pred_check
        %p306 = pneg %p305
      $region50: #{tpu_custom_call.1} parent=5 // pred_check_branch
        %308 = sbr.rel (%p306) target = $region52
      $region51: #{tpu_custom_call.1} parent=5 // pred_region
        // Predicated region
        $region53: #{tpu_custom_call.1} parent=51 // pred_check
          %p309 = pneg %p42
        $region54: #{tpu_custom_call.1} parent=51 // pred_check_branch
          %311 = sbr.rel (%p309) target = $region56
        $region55: #{tpu_custom_call.1} parent=51 // pred_region
          %s312 = sand.u32 %s32, 1
          %s313 = scalar_lea.sflag [#allocation3], %s312
          %s314 = sand.u32 %s32, 1
          %s315 = smul.addr %s314, 64
          %s316 = scalar_lea.vmem [#allocation2], %s315
          %s318 = ssub.s32 1024, 1024
          %319 = vsyncadd %s313, %s318
          %s320 = smul.addr %s22, 8
          %s321 = smul.addr %s320, 128
          %s322 = scalar_lea.hbm %s0, %s321
          %s323 = sshll.u32 %s316, 4
          %s324 = int_to_ptr.vmem [resolvable:$true] %s323
          %329 = dma.hbm_to_vmem [thread:$0]  %s322, 1024, %s324, %s313, 256, 256, 16
        $region56: #{tpu_custom_call.1} parent=51 // pred_fallthru
          _
      $region52: #{tpu_custom_call.1} parent=5 // pred_fallthru
        _
      %p330 = scmp.le.s32.totalorder 1, %s22
      %p331 = scmp.lt.s32.totalorder %s22, 3
      %p332 = pnand %p330, %p331
      %p333 = pneg %p332
      // Predicated region
      $region57: #{tpu_custom_call.1} parent=5 // pred_check
        _
      $region58: #{tpu_custom_call.1} parent=5 // pred_check_branch
        %335 = sbr.rel (%p332) target = $region60
      $region59: #{tpu_custom_call.1} parent=5 // pred_region
        %s336 = ssub.s32 %s22, 1
        %s337 = sand.u32 %s35, 1
        %s338 = scalar_lea.sflag [#allocation3], %s337
        %s339 = sand.u32 %s35, 1
        %s340 = smul.addr %s339, 64
        %s341 = scalar_lea.vmem [#allocation2], %s340
        // Predicated region
        $region61: #{tpu_custom_call.1} parent=59 // pred_check
          %p342 = pneg %p48
        $region62: #{tpu_custom_call.1} parent=59 // pred_check_branch
          %344 = sbr.rel (%p342) target = $region64
        $region63: #{tpu_custom_call.1} parent=59 // pred_region
          %345 = dma.done %s338, 1024
        $region64: #{tpu_custom_call.1} parent=59 // pred_fallthru
          _
        %s346 = sand.u32 %s35, 1
        %s347 = scalar_lea.sflag [#allocation3], %s346
        %s348 = sand.u32 %s35, 1
        %s349 = smul.addr %s348, 64
        %s350 = scalar_lea.vmem [#allocation2], %s349
        %p351 = pneg %p48
        %p352 = pneg %p45
        %p353 = pneg %p69
        %p354 = pneg %p66
        %p355 = pneg %p90
        %p356 = pneg %p87
        %p357 = pneg %p111
        %p358 = pneg %p108
        %p359 = pneg %p132
        %p360 = pneg %p129
        %p361 = pneg %p153
        %p362 = pneg %p150
        %p363 = pneg %p174
        %p364 = pneg %p171
        %p365 = pneg %p195
        %p366 = pneg %p192
        %p367 = pneg %p216
        %p368 = pneg %p213
        %p369 = pneg %p237
        %p370 = pneg %p234
        %p371 = pneg %p263
        %p372 = pneg %p260
        %s373 = sand.u32 %s250, 1
        %s374 = scalar_lea.sflag [#allocation4], %s373
        %s375 = sand.u32 %s250, 1
        %s376 = smul.addr %s375, 64
        %s377 = scalar_lea.vmem [#allocation5], %s376
        %v379 = vld [vmem:[%s1] sm:$0xff]
        %v380 = vld [vmem:[%s1 + $0x8] sm:$0xff]
        %v381 = vld [vmem:[%s1 + $0x10] sm:$0xff]
        %v382 = vld [vmem:[%s1 + $0x18] sm:$0xff]
        %v383 = vld [vmem:[%s1 + $0x20] sm:$0xff]
        %v384 = vld [vmem:[%s1 + $0x28] sm:$0xff]
        %v385 = vld [vmem:[%s1 + $0x30] sm:$0xff]
        %v386 = vld [vmem:[%s1 + $0x38] sm:$0xff]
        %v387 = vld [vmem:[%s1 + $0x40] sm:$0xff]
        %v388 = vld [vmem:[%s1 + $0x48] sm:$0xff]
        %v389 = vld [vmem:[%s1 + $0x50] sm:$0xff]
        %v390 = vld [vmem:[%s1 + $0x58] sm:$0xff]
        %v391 = vld [vmem:[%s1 + $0x60] sm:$0xff]
        %v392 = vld [vmem:[%s1 + $0x68] sm:$0xff]
        %v393 = vld [vmem:[%s1 + $0x70] sm:$0xff]
        %v394 = vld [vmem:[%s1 + $0x78] sm:$0xff]
        %v395 = vld [vmem:[%s1 + $0x80] sm:$0xff]
        %v396 = vld [vmem:[%s1 + $0x88] sm:$0xff]
        %v397 = vld [vmem:[%s1 + $0x90] sm:$0xff]
        %v398 = vld [vmem:[%s1 + $0x98] sm:$0xff]
        %v399 = vld [vmem:[%s1 + $0xa0] sm:$0xff]
        %v400 = vld [vmem:[%s1 + $0xa8] sm:$0xff]
        %v401 = vld [vmem:[%s1 + $0xb0] sm:$0xff]
        %v402 = vld [vmem:[%s1 + $0xb8] sm:$0xff]
        %v403 = vld [vmem:[%s1 + $0xc0] sm:$0xff]
        %v404 = vld [vmem:[%s1 + $0xc8] sm:$0xff]
        %v405 = vld [vmem:[%s1 + $0xd0] sm:$0xff]
        %v406 = vld [vmem:[%s1 + $0xd8] sm:$0xff]
        %v407 = vld [vmem:[%s1 + $0xe0] sm:$0xff]
        %v408 = vld [vmem:[%s1 + $0xe8] sm:$0xff]
        %v409 = vld [vmem:[%s1 + $0xf0] sm:$0xff]
        %v410 = vld [vmem:[%s1 + $0xf8] sm:$0xff]
        %v411 = vld [vmem:[%s2] sm:$0xf]
        %v412 = vld [vmem:[%s2 + $0x4] sm:$0xf]
        %v413 = vld [vmem:[%s2 + $0x8] sm:$0xf]
        %v414 = vld [vmem:[%s2 + $0xc] sm:$0xf]
        %v415 = vld [vmem:[%s2 + $0x10] sm:$0xf]
        %v416 = vld [vmem:[%s2 + $0x14] sm:$0xf]
        %v417 = vld [vmem:[%s2 + $0x18] sm:$0xf]
        %v418 = vld [vmem:[%s2 + $0x1c] sm:$0xf]
        %v419 = vld [vmem:[%s2 + $0x20] sm:$0x1]
        %v420 = vld [vmem:[%s3] sm:$0xff]
        %v421 = vld [vmem:[%s3 + $0x8] sm:$0xff]
        %v422 = vld [vmem:[%s3 + $0x10] sm:$0xff]
        %v423 = vld [vmem:[%s3 + $0x18] sm:$0xff]
        %v424 = vld [vmem:[%s3 + $0x20] sm:$0xff]
        %v425 = vld [vmem:[%s3 + $0x28] sm:$0xff]
        %v426 = vld [vmem:[%s3 + $0x30] sm:$0xff]
        %v427 = vld [vmem:[%s3 + $0x38] sm:$0xff]
        %v428 = vld [vmem:[%s3 + $0x40] sm:$0x1]
        %v429 = vld [vmem:[%s4] sm:$0xf]
        %v430 = vld [vmem:[%s4 + $0x4] sm:$0xf]
        %v431 = vld [vmem:[%s4 + $0x8] sm:$0xf]
        %v432 = vld [vmem:[%s4 + $0xc] sm:$0xf]
        %v433 = vld [vmem:[%s5] sm:$0xff]
        %v434 = vld [vmem:[%s5 + $0x8] sm:$0xff]
        %v435 = vld [vmem:[%s5 + $0x10] sm:$0xff]
        %v436 = vld [vmem:[%s5 + $0x18] sm:$0xff]
        %v437 = vld [vmem:[%s6] sm:$0xf]
        %v438 = vld [vmem:[%s6 + $0x4] sm:$0xf]
        %v439 = vld [vmem:[%s6 + $0x8] sm:$0xf]
        %v440 = vld [vmem:[%s6 + $0xc] sm:$0xf]
        %v441 = vld [vmem:[%s6 + $0x10] sm:$0xf]
        %v442 = vld [vmem:[%s6 + $0x14] sm:$0xf]
        %v443 = vld [vmem:[%s6 + $0x18] sm:$0xf]
        %v444 = vld [vmem:[%s6 + $0x1c] sm:$0xf]
        %v445 = vld [vmem:[%s7] sm:$0xff]
        %v446 = vld [vmem:[%s7 + $0x8] sm:$0xff]
        %v447 = vld [vmem:[%s7 + $0x10] sm:$0xff]
        %v448 = vld [vmem:[%s7 + $0x18] sm:$0xff]
        %v449 = vld [vmem:[%s7 + $0x20] sm:$0xff]
        %v450 = vld [vmem:[%s7 + $0x28] sm:$0xff]
        %v451 = vld [vmem:[%s7 + $0x30] sm:$0xff]
        %v452 = vld [vmem:[%s7 + $0x38] sm:$0xff]
        %v453 = vld [vmem:[%s8] sm:$0xf]
        %v454 = vld [vmem:[%s8 + $0x4] sm:$0xf]
        %v455 = vld [vmem:[%s8 + $0x8] sm:$0xf]
        %v456 = vld [vmem:[%s8 + $0xc] sm:$0xf]
        %v457 = vld [vmem:[%s9] sm:$0xff]
        %v458 = vld [vmem:[%s9 + $0x8] sm:$0xff]
        %v459 = vld [vmem:[%s9 + $0x10] sm:$0xff]
        %v460 = vld [vmem:[%s9 + $0x18] sm:$0xff]
        %v461 = vld [vmem:[%s341] sm:$0xff]
        %v462 = vld [vmem:[%s341 + $0x8] sm:$0xff]
        %v463 = vld [vmem:[%s341 + $0x10] sm:$0xff]
        %v464 = vld [vmem:[%s341 + $0x18] sm:$0xff]
        %v465 = vld [vmem:[%s341 + $0x20] sm:$0xff]
        %v466 = vld [vmem:[%s341 + $0x28] sm:$0xff]
        %v467 = vld [vmem:[%s341 + $0x30] sm:$0xff]
        %v468 = vld [vmem:[%s341 + $0x38] sm:$0xff]
        %v469 = vadd.f32 %v461, %v462
        %v470 = vadd.f32 %v469, %v463
        %v471 = vadd.f32 %v470, %v464
        %v472 = vadd.f32 %v471, %v465
        %v473 = vadd.f32 %v472, %v466
        %v474 = vadd.f32 %v473, %v467
        %v475 = vadd.f32 %v474, %v468
        %476 = vadd.xlane.f32.xlu0 %v475
        %v477 = vpop.xlane.xlu0 %476
        %v478 = vrot.slane %v477, 4
        %v479 = vadd.f32 %v477, %v478
        %v480 = vrot.slane %v479, 2
        %v481 = vadd.f32 %v479, %v480
        %v482 = vrot.slane %v481, 1
        %v483 = vadd.f32 %v481, %v482
        %s484 = vtos %v483
        %v485 = vrcp.pop 8192.0
        %s486 = vtos %v485
        %s487 = smul.f32 %s484, %s486
        %v488 = vmul.f32 %v461, %v461
        %v489 = vmul.f32 %v462, %v462
        %v490 = vmul.f32 %v463, %v463
        %v491 = vmul.f32 %v464, %v464
        %v492 = vmul.f32 %v465, %v465
        %v493 = vmul.f32 %v466, %v466
        %v494 = vmul.f32 %v467, %v467
        %v495 = vmul.f32 %v468, %v468
        %v496 = vadd.f32 %v488, %v489
        %v497 = vadd.f32 %v496, %v490
        %v498 = vadd.f32 %v497, %v491
        %v499 = vadd.f32 %v498, %v492
        %v500 = vadd.f32 %v499, %v493
        %v501 = vadd.f32 %v500, %v494
        %v502 = vadd.f32 %v501, %v495
        %503 = vadd.xlane.f32.xlu0 %v502
        %v504 = vpop.xlane.xlu0 %503
        %v505 = vrot.slane %v504, 4
        %v506 = vadd.f32 %v504, %v505
        %v507 = vrot.slane %v506, 2
        %v508 = vadd.f32 %v506, %v507
        %v509 = vrot.slane %v508, 1
        %v510 = vadd.f32 %v508, %v509
        %s511 = vtos %v510
        %v512 = vrcp.pop 8192.0
        %s513 = vtos %v512
        %s514 = smul.f32 %s511, %s513
        %s515 = smul.f32 %s487, %s487
        %s516 = ssub.f32 %s514, %s515
        %v517 = vstv %s487
        %v518 = vsub.f32 %v461, %v517
        %v519 = vsub.f32 %v462, %v517
        %v520 = vsub.f32 %v463, %v517
        %v521 = vsub.f32 %v464, %v517
        %v522 = vsub.f32 %v465, %v517
        %v523 = vsub.f32 %v466, %v517
        %v524 = vsub.f32 %v467, %v517
        %v525 = vsub.f32 %v468, %v517
        %s526 = sadd.f32 %s516, 1e-05
        %v527 = vstv %s526
        %v528 = vrsqrt.pop %v527
        %s529 = vtos %v528
        %v530 = vstv %s529
        %v531 = vmul.f32 %v518, %v530
        %v532 = vmul.f32 %v519, %v530
        %v533 = vmul.f32 %v520, %v530
        %v534 = vmul.f32 %v521, %v530
        %v535 = vmul.f32 %v522, %v530
        %v536 = vmul.f32 %v523, %v530
        %v537 = vmul.f32 %v524, %v530
        %v538 = vmul.f32 %v525, %v530
        %v539 = vpack.c.bf16 %v533, %v531
        %v540 = vpack.c.bf16 %v534, %v532
        %v541 = vpack.c.bf16 %v537, %v535
        %v542 = vpack.c.bf16 %v538, %v536
        %544 = vset.pattern.permute.xlu0 0
        %545 = vperm.xlu0 %544, %v420
        %v546 = vpop.permute.xlu0 %545
        %549 = vset.pattern.permute.xlu0 0
        %550 = vperm.xlu0 %549, %v421
        %v551 = vpop.permute.xlu0 %550
        %554 = vset.pattern.permute.xlu0 0
        %555 = vperm.xlu0 %554, %v422
        %v556 = vpop.permute.xlu0 %555
        %559 = vset.pattern.permute.xlu0 0
        %560 = vperm.xlu0 %559, %v423
        %v561 = vpop.permute.xlu0 %560
        %564 = vset.pattern.permute.xlu0 0
        %565 = vperm.xlu0 %564, %v424
        %v566 = vpop.permute.xlu0 %565
        %569 = vset.pattern.permute.xlu0 0
        %570 = vperm.xlu0 %569, %v425
        %v571 = vpop.permute.xlu0 %570
        %574 = vset.pattern.permute.xlu0 0
        %575 = vperm.xlu0 %574, %v426
        %v576 = vpop.permute.xlu0 %575
        %579 = vset.pattern.permute.xlu0 0
        %580 = vperm.xlu0 %579, %v427
        %v581 = vpop.permute.xlu0 %580
        %584 = vset.pattern.permute.xlu0 0
        %585 = vperm.xlu0 %584, %v428
        %v586 = vpop.permute.xlu0 %585
        %v597 = vunpack.c.l.b16 %v411
        %v598 = vunpack.c.l.b16 %v412
        %v599 = vunpack.c.l.b16 %v413
        %v600 = vunpack.c.l.b16 %v414
        %v601 = vunpack.c.l.b16 %v415
        %v602 = vunpack.c.l.b16 %v416
        %v603 = vunpack.c.l.b16 %v417
        %v604 = vunpack.c.l.b16 %v418
        %v605 = vunpack.c.l.b16 %v419
        %v606 = vpack.c.b16 %v598, %v597
        %v607 = vpack.c.b16 %v600, %v599
        %v608 = vpack.c.b16 %v602, %v601
        %v609 = vpack.c.b16 %v604, %v603
        %v610 = vpack.c.b16 %v605, %v605
        %vm611 = vcmask 261120
        %v613 = vsel %vm611, %v606, 0
        %v616 = vsel %vm611, %v607, 0
        %v619 = vsel %vm611, %v608, 0
        %v622 = vsel %vm611, %v609, 0
        %v625 = vsel %vm611, %v610, 0
        %627 = vmatprep.subr.bf16.mxu0 %v540
        %628 = vmatpush1.bf16.msra.mxu0 %v539
        %629 = vmatprep.subr.bf16.mxu0 %v542
        %630 = vmatpush1.bf16.msra.mxu0 %v541
        %631 = vmatprep.subr.bf16.mxu0 0
        %632 = vmatpush1.bf16.msra.mxu0 0
        %633 = vmatprep.subr.bf16.mxu0 0
        %634 = vmatpush1.bf16.msra.mxu0 0
        %635 = vmatprep.subr.bf16.mxu0 0
        %636 = vmatpush1.bf16.msra.mxu0 0
        %637 = vmatprep.subr.bf16.mxu0 0
        %638 = vmatpush1.bf16.msra.mxu0 0
        %639 = vmatprep.subr.bf16.mxu0 0
        %640 = vmatpush1.bf16.msra.mxu0 0
        %641 = vmatprep.subr.bf16.mxu0 0
        %642 = vmatpush1.bf16.msra.mxu0 0
        %643 = vmatprep.subr.bf16.mxu0 0
        %644 = vmatpush1.bf16.msra.mxu0 0
        %645 = vmatprep.subr.bf16.mxu0 0
        %646 = vmatpush1.bf16.msra.mxu0 0
        %647 = vmatprep.subr.bf16.mxu0 0
        %648 = vmatpush1.bf16.msra.mxu0 0
        %649 = vmatprep.subr.bf16.mxu0 0
        %650 = vmatpush1.bf16.msra.mxu0 0
        %651 = vmatprep.subr.bf16.mxu0 0
        %652 = vmatpush1.bf16.msra.mxu0 0
        %653 = vmatprep.subr.bf16.mxu0 0
        %654 = vmatpush1.bf16.msra.mxu0 0
        %655 = vmatprep.subr.bf16.mxu0 0
        %656 = vmatpush1.bf16.msra.mxu0 0
        %657 = vmatprep.subr.bf16.mxu0 0
        %658 = vmatpush1.bf16.msra.mxu0 0
        %659 = vmatprep.mubr.bf16.mxu0 0
        %660 = vmatmul.mubr.bf16.gmra.mrb[0].mxu0 %v613
        %v661 = vpop.f32.mrb[0].mxu0
        %v662 = vadd.f32 %v546, %v661
        %v663 = vpop.f32.mrb[0].mxu0
        %v664 = vadd.f32 %v546, %v663
        %v665 = vpop.f32.mrb[0].mxu0
        %v666 = vadd.f32 %v551, %v665
        %v667 = vpop.f32.mrb[0].mxu0
        %v668 = vadd.f32 %v551, %v667
        %669 = vmatprep.mubr.bf16.mxu0 0
        %670 = vmatmul.mubr.bf16.gmra.mrb[0].mxu0 %v616
        %v671 = vpop.f32.mrb[0].mxu0
        %v672 = vadd.f32 %v556, %v671
        %v673 = vpop.f32.mrb[0].mxu0
        %v674 = vadd.f32 %v556, %v673
        %v675 = vpop.f32.mrb[0].mxu0
        %v676 = vadd.f32 %v561, %v675
        %v677 = vpop.f32.mrb[0].mxu0
        %v678 = vadd.f32 %v561, %v677
        %679 = vmatprep.mubr.bf16.mxu0 0
        %680 = vmatmul.mubr.bf16.gmra.mrb[0].mxu0 %v619
        %v681 = vpop.f32.mrb[0].mxu0
        %v682 = vadd.f32 %v566, %v681
        %v683 = vpop.f32.mrb[0].mxu0
        %v684 = vadd.f32 %v566, %v683
        %v685 = vpop.f32.mrb[0].mxu0
        %v686 = vadd.f32 %v571, %v685
        %v687 = vpop.f32.mrb[0].mxu0
        %v688 = vadd.f32 %v571, %v687
        %689 = vmatprep.mubr.bf16.mxu0 0
        %690 = vmatmul.mubr.bf16.gmra.mrb[0].mxu0 %v622
        %v691 = vpop.f32.mrb[0].mxu0
        %v692 = vadd.f32 %v576, %v691
        %v693 = vpop.f32.mrb[0].mxu0
        %v694 = vadd.f32 %v576, %v693
        %v695 = vpop.f32.mrb[0].mxu0
        %v696 = vadd.f32 %v581, %v695
        %v697 = vpop.f32.mrb[0].mxu0
        %v698 = vadd.f32 %v581, %v697
        %699 = vmatprep.mubr.bf16.mxu0 0
        %700 = vmatmul.mubr.bf16.gmra.mrb[0].mxu0 %v625
        %v701 = vpop.f32.mrb[0].mxu0
        %v702 = vadd.f32 %v586, %v701
        %v703 = vpop.f32.mrb[0].mxu0
        %v704 = vadd.f32 %v586, %v703
        %v705 = vpop.f32.mrb[0].mxu0
        %v706 = vpop.f32.mrb[0].mxu0
        %707 = vdwg.mxu0
        %vm708 = vcmask 1040384
        %v709 = vsel %vm708, %v702, -inf
        %v710 = vsel %vm708, %v704, -inf
        %v711 = vmax.f32 %v709, %v710
        %712 = vmax.xlane.f32.xlu0 %v711
        %v713 = vpop.xlane.xlu0 %712
        %v714 = vrot.slane %v713, 4
        %v715 = vmax.f32 %v713, %v714
        %v716 = vrot.slane %v715, 2
        %v717 = vmax.f32 %v715, %v716
        %v718 = vrot.slane %v717, 1
        %v719 = vmax.f32 %v717, %v718
        %s720 = vtos %v719
        %v721 = vstv %s720
        %v722 = vsub.f32 %v702, %v721
        %v723 = vsub.f32 %v704, %v721
        %v724 = vmul.f32 %v722, 1.442695
        %v725 = vpow.pop %v724
        %v726 = vmul.f32 %v723, 1.442695
        %v727 = vpow.pop %v726
        %v728 = vlaneseq
        %v729 = vshrl.u32 %v728, 7
        %v730 = vsub.s32 0, %v729
        %v731 = vrot.slane %v725, %v730
        %v732 = vlaneseq
        %v733 = vshrl.u32 %v732, 7
        %v734 = vsub.s32 0, %v733
        %v735 = vrot.slane %v727, %v734
        %v736 = vmul.f32 %v662, %v731
        %v737 = vmul.f32 %v664, %v735
        %v738 = vmul.f32 %v666, %v731
        %v739 = vmul.f32 %v668, %v735
        %v740 = vmul.f32 %v672, %v731
        %v741 = vmul.f32 %v674, %v735
        %v742 = vmul.f32 %v676, %v731
        %v743 = vmul.f32 %v678, %v735
        %v744 = vpack.c.bf16 %v738, %v736
        %v745 = vpack.c.bf16 %v739, %v737
        %v746 = vpack.c.bf16 %v742, %v740
        %v747 = vpack.c.bf16 %v743, %v741
        %v780 = vunpack.c.l.b16 %v379
        %v781 = vunpack.c.h.b16 %v379
        %v782 = vunpack.c.l.b16 %v380
        %v783 = vunpack.c.h.b16 %v380
        %v784 = vunpack.c.l.b16 %v381
        %v785 = vunpack.c.h.b16 %v381
        %v786 = vunpack.c.l.b16 %v382
        %v787 = vunpack.c.h.b16 %v382
        %v788 = vunpack.c.l.b16 %v383
        %v789 = vunpack.c.h.b16 %v383
        %v790 = vunpack.c.l.b16 %v384
        %v791 = vunpack.c.h.b16 %v384
        %v792 = vunpack.c.l.b16 %v385
        %v793 = vunpack.c.h.b16 %v385
        %v794 = vunpack.c.l.b16 %v386
        %v795 = vunpack.c.h.b16 %v386
        %v796 = vunpack.c.l.b16 %v387
        %v797 = vunpack.c.h.b16 %v387
        %v798 = vunpack.c.l.b16 %v388
        %v799 = vunpack.c.h.b16 %v388
        %v800 = vunpack.c.l.b16 %v389
        %v801 = vunpack.c.h.b16 %v389
        %v802 = vunpack.c.l.b16 %v390
        %v803 = vunpack.c.h.b16 %v390
        %v804 = vunpack.c.l.b16 %v391
        %v805 = vunpack.c.h.b16 %v391
        %v806 = vunpack.c.l.b16 %v392
        %v807 = vunpack.c.h.b16 %v392
        %v808 = vunpack.c.l.b16 %v393
        %v809 = vunpack.c.h.b16 %v393
        %v810 = vunpack.c.l.b16 %v394
        %v811 = vunpack.c.h.b16 %v394
        %v812 = vunpack.c.l.b16 %v395
        %v813 = vunpack.c.h.b16 %v395
        %v814 = vunpack.c.l.b16 %v396
        %v815 = vunpack.c.h.b16 %v396
        %v816 = vunpack.c.l.b16 %v397
        %v817 = vunpack.c.h.b16 %v397
        %v818 = vunpack.c.l.b16 %v398
        %v819 = vunpack.c.h.b16 %v398
        %v820 = vunpack.c.l.b16 %v399
        %v821 = vunpack.c.h.b16 %v399
        %v822 = vunpack.c.l.b16 %v400
        %v823 = vunpack.c.h.b16 %v400
        %v824 = vunpack.c.l.b16 %v401
        %v825 = vunpack.c.h.b16 %v401
        %v826 = vunpack.c.l.b16 %v402
        %v827 = vunpack.c.h.b16 %v402
        %v828 = vunpack.c.l.b16 %v403
        %v829 = vunpack.c.h.b16 %v403
        %v830 = vunpack.c.l.b16 %v404
        %v831 = vunpack.c.h.b16 %v404
        %v832 = vunpack.c.l.b16 %v405
        %v833 = vunpack.c.h.b16 %v405
        %v834 = vunpack.c.l.b16 %v406
        %v835 = vunpack.c.h.b16 %v406
        %v836 = vunpack.c.l.b16 %v407
        %v837 = vunpack.c.h.b16 %v407
        %v838 = vunpack.c.l.b16 %v408
        %v839 = vunpack.c.h.b16 %v408
        %v840 = vunpack.c.l.b16 %v409
        %v841 = vunpack.c.h.b16 %v409
        %v842 = vunpack.c.l.b16 %v410
        %v843 = vunpack.c.h.b16 %v410
        %v844 = vpack.c.b16 %v782, %v780
        %v845 = vpack.c.b16 %v783, %v781
        %v846 = vpack.c.b16 %v786, %v784
        %v847 = vpack.c.b16 %v787, %v785
        %v848 = vpack.c.b16 %v790, %v788
        %v849 = vpack.c.b16 %v791, %v789
        %v850 = vpack.c.b16 %v794, %v792
        %v851 = vpack.c.b16 %v795, %v793
        %v852 = vpack.c.b16 %v798, %v796
        %v853 = vpack.c.b16 %v799, %v797
        %v854 = vpack.c.b16 %v802, %v800
        %v855 = vpack.c.b16 %v803, %v801
        %v856 = vpack.c.b16 %v806, %v804
        %v857 = vpack.c.b16 %v807, %v805
        %v858 = vpack.c.b16 %v810, %v808
        %v859 = vpack.c.b16 %v811, %v809
        %v860 = vpack.c.b16 %v814, %v812
        %v861 = vpack.c.b16 %v815, %v813
        %v862 = vpack.c.b16 %v818, %v816
        %v863 = vpack.c.b16 %v819, %v817
        %v864 = vpack.c.b16 %v822, %v820
        %v865 = vpack.c.b16 %v823, %v821
        %v866 = vpack.c.b16 %v826, %v824
        %v867 = vpack.c.b16 %v827, %v825
        %v868 = vpack.c.b16 %v830, %v828
        %v869 = vpack.c.b16 %v831, %v829
        %v870 = vpack.c.b16 %v834, %v832
        %v871 = vpack.c.b16 %v835, %v833
        %v872 = vpack.c.b16 %v838, %v836
        %v873 = vpack.c.b16 %v839, %v837
        %v874 = vpack.c.b16 %v842, %v840
        %v875 = vpack.c.b16 %v843, %v841
        %908 = vmatprep.subr.bf16.mxu0 %v845
        %909 = vmatpush1.bf16.msra.mxu0 %v844
        %910 = vmatprep.subr.bf16.mxu0 %v847
        %911 = vmatpush1.bf16.msra.mxu0 %v846
        %912 = vmatprep.subr.bf16.mxu0 %v849
        %913 = vmatpush1.bf16.msra.mxu0 %v848
        %914 = vmatprep.subr.bf16.mxu0 %v851
        %915 = vmatpush1.bf16.msra.mxu0 %v850
        %916 = vmatprep.subr.bf16.mxu0 %v853
        %917 = vmatpush1.bf16.msra.mxu0 %v852
        %918 = vmatprep.subr.bf16.mxu0 %v855
        %919 = vmatpush1.bf16.msra.mxu0 %v854
        %920 = vmatprep.subr.bf16.mxu0 %v857
        %921 = vmatpush1.bf16.msra.mxu0 %v856
        %922 = vmatprep.subr.bf16.mxu0 %v859
        %923 = vmatpush1.bf16.msra.mxu0 %v858
        %924 = vmatprep.subr.bf16.mxu0 %v861
        %925 = vmatpush1.bf16.msra.mxu0 %v860
        %926 = vmatprep.subr.bf16.mxu0 %v863
        %927 = vmatpush1.bf16.msra.mxu0 %v862
        %928 = vmatprep.subr.bf16.mxu0 %v865
        %929 = vmatpush1.bf16.msra.mxu0 %v864
        %930 = vmatprep.subr.bf16.mxu0 %v867
        %931 = vmatpush1.bf16.msra.mxu0 %v866
        %932 = vmatprep.subr.bf16.mxu0 %v869
        %933 = vmatpush1.bf16.msra.mxu0 %v868
        %934 = vmatprep.subr.bf16.mxu0 %v871
        %935 = vmatpush1.bf16.msra.mxu0 %v870
        %936 = vmatprep.subr.bf16.mxu0 %v873
        %937 = vmatpush1.bf16.msra.mxu0 %v872
        %938 = vmatprep.subr.bf16.mxu0 %v875
        %939 = vmatpush1.bf16.msra.mxu0 %v874
        %940 = vmatprep.mubr.bf16.mxu0 %v745
        %941 = vmatmul.mubr.bf16.gmra.mrb[0].mxu0 %v744
        %v942 = vpop.f32.mrb[0].mxu0
        %v943 = vadd.f32 0.0, %v942
        %v944 = vpop.f32.mrb[0].mxu0
        %v945 = vadd.f32 0.0, %v944
        %v946 = vpop.f32.mrb[0].mxu0
        %v947 = vadd.f32 0.0, %v946
        %v948 = vpop.f32.mrb[0].mxu0
        %v949 = vadd.f32 0.0, %v948
        %950 = vmatprep.mubr.bf16.mxu0 %v747
        %951 = vmatmul.mubr.bf16.gmra.mrb[0].mxu0 %v746
        %v952 = vpop.f32.mrb[0].mxu0
        %v953 = vadd.f32 0.0, %v952
        %v954 = vpop.f32.mrb[0].mxu0
        %v955 = vadd.f32 0.0, %v954
        %v956 = vpop.f32.mrb[0].mxu0
        %v957 = vadd.f32 0.0, %v956
        %v958 = vpop.f32.mrb[0].mxu0
        %v959 = vadd.f32 0.0, %v958
        %960 = vdwg.mxu0
        %v961 = vpack.c.bf16 %v725, %v725
        %v962 = vpack.c.bf16 %v727, %v727
        %963 = vmatprep.subr.bf16.mxu0 %v845
        %964 = vmatpush1.bf16.msra.mxu0 %v844
        %965 = vmatprep.subr.bf16.mxu0 %v847
        %966 = vmatpush1.bf16.msra.mxu0 %v846
        %967 = vmatprep.subr.bf16.mxu0 %v849
        %968 = vmatpush1.bf16.msra.mxu0 %v848
        %969 = vmatprep.subr.bf16.mxu0 %v851
        %970 = vmatpush1.bf16.msra.mxu0 %v850
        %971 = vmatprep.subr.bf16.mxu0 %v853
        %972 = vmatpush1.bf16.msra.mxu0 %v852
        %973 = vmatprep.subr.bf16.mxu0 %v855
        %974 = vmatpush1.bf16.msra.mxu0 %v854
        %975 = vmatprep.subr.bf16.mxu0 %v857
        %976 = vmatpush1.bf16.msra.mxu0 %v856
        %977 = vmatprep.subr.bf16.mxu0 %v859
        %978 = vmatpush1.bf16.msra.mxu0 %v858
        %979 = vmatprep.subr.bf16.mxu0 %v861
        %980 = vmatpush1.bf16.msra.mxu0 %v860
        %981 = vmatprep.subr.bf16.mxu0 %v863
        %982 = vmatpush1.bf16.msra.mxu0 %v862
        %983 = vmatprep.subr.bf16.mxu0 %v865
        %984 = vmatpush1.bf16.msra.mxu0 %v864
        %985 = vmatprep.subr.bf16.mxu0 %v867
        %986 = vmatpush1.bf16.msra.mxu0 %v866
        %987 = vmatprep.subr.bf16.mxu0 %v869
        %988 = vmatpush1.bf16.msra.mxu0 %v868
        %989 = vmatprep.subr.bf16.mxu0 %v871
        %990 = vmatpush1.bf16.msra.mxu0 %v870
        %991 = vmatprep.subr.bf16.mxu0 %v873
        %992 = vmatpush1.bf16.msra.mxu0 %v872
        %993 = vmatprep.subr.bf16.mxu0 %v875
        %994 = vmatpush1.bf16.msra.mxu0 %v874
        %995 = vmatprep.mubr.bf16.mxu0 %v962
        %996 = vmatmul.mubr.bf16.gmra.mrb[0].mxu0 %v961
        %v997 = vpop.f32.mrb[0].mxu0
        %v998 = vadd.f32 0.0, %v997
        %v999 = vpop.f32.mrb[0].mxu0
        %v1000 = vadd.f32 0.0, %v999
        %v1001 = vpop.f32.mrb[0].mxu0
        %v1002 = vpop.f32.mrb[0].mxu0
        %1003 = vdwg.mxu0
        %v1004 = vlaneseq
        %v1005 = vshrl.u32 %v1004, 7
        %v1006 = vsub.s32 0, %v1005
        %v1007 = vrot.slane %v998, %v1006
        %v1008 = vlaneseq
        %v1009 = vshrl.u32 %v1008, 7
        %v1010 = vsub.s32 0, %v1009
        %v1011 = vrot.slane %v1000, %v1010
        %v1012 = vrcp.pop %v1007
        %v1013 = vmul.f32 %v943, %v1012
        %v1014 = vrcp.pop %v1011
        %v1015 = vmul.f32 %v945, %v1014
        %v1016 = vmul.f32 %v947, %v1012
        %v1017 = vmul.f32 %v949, %v1014
        %v1018 = vmul.f32 %v953, %v1012
        %v1019 = vmul.f32 %v955, %v1014
        %v1020 = vmul.f32 %v957, %v1012
        %v1021 = vmul.f32 %v959, %v1014
        %v1022 = vmax.f32 %v682, 0.0
        %v1023 = vmax.f32 %v684, 0.0
        %v1024 = vmax.f32 %v686, 0.0
        %v1025 = vmax.f32 %v688, 0.0
        %v1026 = vmax.f32 %v692, 0.0
        %v1027 = vmax.f32 %v694, 0.0
        %v1028 = vmax.f32 %v696, 0.0
        %v1029 = vmax.f32 %v698, 0.0
        %v1030 = vmul.f32 %v1022, %v1013
        %v1031 = vmul.f32 %v1023, %v1015
        %v1032 = vmul.f32 %v1024, %v1016
        %v1033 = vmul.f32 %v1025, %v1017
        %v1034 = vmul.f32 %v1026, %v1018
        %v1035 = vmul.f32 %v1027, %v1019
        %v1036 = vmul.f32 %v1028, %v1020
        %v1037 = vmul.f32 %v1029, %v1021
        %v1038 = vpack.c.bf16 %v1032, %v1030
        %v1039 = vpack.c.bf16 %v1033, %v1031
        %v1040 = vpack.c.bf16 %v1036, %v1034
        %v1041 = vpack.c.bf16 %v1037, %v1035
        %1043 = vset.pattern.permute.xlu0 0
        %1044 = vperm.xlu0 %1043, %v433
        %v1045 = vpop.permute.xlu0 %1044
        %1048 = vset.pattern.permute.xlu0 0
        %1049 = vperm.xlu0 %1048, %v434
        %v1050 = vpop.permute.xlu0 %1049
        %1053 = vset.pattern.permute.xlu0 0
        %1054 = vperm.xlu0 %1053, %v435
        %v1055 = vpop.permute.xlu0 %1054
        %1058 = vset.pattern.permute.xlu0 0
        %1059 = vperm.xlu0 %1058, %v436
        %v1060 = vpop.permute.xlu0 %1059
        %v1066 = vunpack.c.l.b16 %v429
        %v1067 = vunpack.c.l.b16 %v430
        %v1068 = vunpack.c.l.b16 %v431
        %v1069 = vunpack.c.l.b16 %v432
        %v1070 = vpack.c.b16 %v1067, %v1066
        %v1071 = vpack.c.b16 %v1069, %v1068
        %v1073 = vsel %vm611, %v1070, 0
        %v1076 = vsel %vm611, %v1071, 0
        %1078 = vmatprep.subr.bf16.mxu0 %v1039
        %1079 = vmatpush1.bf16.msra.mxu0 %v1038
        %1080 = vmatprep.subr.bf16.mxu0 %v1041
        %1081 = vmatpush1.bf16.msra.mxu0 %v1040
        %1082 = vmatprep.subr.bf16.mxu0 0
        %1083 = vmatpush1.bf16.msra.mxu0 0
        %1084 = vmatprep.subr.bf16.mxu0 0
        %1085 = vmatpush1.bf16.msra.mxu0 0
        %1086 = vmatprep.subr.bf16.mxu0 0
        %1087 = vmatpush1.bf16.msra.mxu0 0
        %1088 = vmatprep.subr.bf16.mxu0 0
        %1089 = vmatpush1.bf16.msra.mxu0 0
        %1090 = vmatprep.subr.bf16.mxu0 0
        %1091 = vmatpush1.bf16.msra.mxu0 0
        %1092 = vmatprep.subr.bf16.mxu0 0
        %1093 = vmatpush1.bf16.msra.mxu0 0
        %1094 = vmatprep.subr.bf16.mxu0 0
        %1095 = vmatpush1.bf16.msra.mxu0 0
        %1096 = vmatprep.subr.bf16.mxu0 0
        %1097 = vmatpush1.bf16.msra.mxu0 0
        %1098 = vmatprep.subr.bf16.mxu0 0
        %1099 = vmatpush1.bf16.msra.mxu0 0
        %1100 = vmatprep.subr.bf16.mxu0 0
        %1101 = vmatpush1.bf16.msra.mxu0 0
        %1102 = vmatprep.subr.bf16.mxu0 0
        %1103 = vmatpush1.bf16.msra.mxu0 0
        %1104 = vmatprep.subr.bf16.mxu0 0
        %1105 = vmatpush1.bf16.msra.mxu0 0
        %1106 = vmatprep.subr.bf16.mxu0 0
        %1107 = vmatpush1.bf16.msra.mxu0 0
        %1108 = vmatprep.subr.bf16.mxu0 0
        %1109 = vmatpush1.bf16.msra.mxu0 0
        %1110 = vmatprep.mubr.bf16.mxu0 0
        %1111 = vmatmul.mubr.bf16.gmra.mrb[0].mxu0 %v1073
        %v1112 = vpop.f32.mrb[0].mxu0
        %v1113 = vadd.f32 %v1045, %v1112
        %v1114 = vpop.f32.mrb[0].mxu0
        %v1115 = vadd.f32 %v1045, %v1114
        %v1116 = vpop.f32.mrb[0].mxu0
        %v1117 = vadd.f32 %v1050, %v1116
        %v1118 = vpop.f32.mrb[0].mxu0
        %v1119 = vadd.f32 %v1050, %v1118
        %1120 = vmatprep.mubr.bf16.mxu0 0
        %1121 = vmatmul.mubr.bf16.gmra.mrb[0].mxu0 %v1076
        %v1122 = vpop.f32.mrb[0].mxu0
        %v1123 = vadd.f32 %v1055, %v1122
        %v1124 = vpop.f32.mrb[0].mxu0
        %v1125 = vadd.f32 %v1055, %v1124
        %v1126 = vpop.f32.mrb[0].mxu0
        %v1127 = vadd.f32 %v1060, %v1126
        %v1128 = vpop.f32.mrb[0].mxu0
        %v1129 = vadd.f32 %v1060, %v1128
        %1130 = vdwg.mxu0
        %v1131 = vadd.f32 %v461, %v1113
        %v1132 = vadd.f32 %v462, %v1115
        %v1133 = vadd.f32 %v463, %v1117
        %v1134 = vadd.f32 %v464, %v1119
        %v1135 = vadd.f32 %v465, %v1123
        %v1136 = vadd.f32 %v466, %v1125
        %v1137 = vadd.f32 %v467, %v1127
        %v1138 = vadd.f32 %v468, %v1129
        %v1139 = vadd.f32 %v1131, %v1132
        %v1140 = vadd.f32 %v1139, %v1133
        %v1141 = vadd.f32 %v1140, %v1134
        %v1142 = vadd.f32 %v1141, %v1135
        %v1143 = vadd.f32 %v1142, %v1136
        %v1144 = vadd.f32 %v1143, %v1137
        %v1145 = vadd.f32 %v1144, %v1138
        %1146 = vadd.xlane.f32.xlu0 %v1145
        %v1147 = vpop.xlane.xlu0 %1146
        %v1148 = vrot.slane %v1147, 4
        %v1149 = vadd.f32 %v1147, %v1148
        %v1150 = vrot.slane %v1149, 2
        %v1151 = vadd.f32 %v1149, %v1150
        %v1152 = vrot.slane %v1151, 1
        %v1153 = vadd.f32 %v1151, %v1152
        %s1154 = vtos %v1153
        %v1155 = vrcp.pop 8192.0
        %s1156 = vtos %v1155
        %s1157 = smul.f32 %s1154, %s1156
        %v1158 = vmul.f32 %v1131, %v1131
        %v1159 = vmul.f32 %v1132, %v1132
        %v1160 = vmul.f32 %v1133, %v1133
        %v1161 = vmul.f32 %v1134, %v1134
        %v1162 = vmul.f32 %v1135, %v1135
        %v1163 = vmul.f32 %v1136, %v1136
        %v1164 = vmul.f32 %v1137, %v1137
        %v1165 = vmul.f32 %v1138, %v1138
        %v1166 = vadd.f32 %v1158, %v1159
        %v1167 = vadd.f32 %v1166, %v1160
        %v1168 = vadd.f32 %v1167, %v1161
        %v1169 = vadd.f32 %v1168, %v1162
        %v1170 = vadd.f32 %v1169, %v1163
        %v1171 = vadd.f32 %v1170, %v1164
        %v1172 = vadd.f32 %v1171, %v1165
        %1173 = vadd.xlane.f32.xlu0 %v1172
        %v1174 = vpop.xlane.xlu0 %1173
        %v1175 = vrot.slane %v1174, 4
        %v1176 = vadd.f32 %v1174, %v1175
        %v1177 = vrot.slane %v1176, 2
        %v1178 = vadd.f32 %v1176, %v1177
        %v1179 = vrot.slane %v1178, 1
        %v1180 = vadd.f32 %v1178, %v1179
        %s1181 = vtos %v1180
        %v1182 = vrcp.pop 8192.0
        %s1183 = vtos %v1182
        %s1184 = smul.f32 %s1181, %s1183
        %s1185 = smul.f32 %s1157, %s1157
        %s1186 = ssub.f32 %s1184, %s1185
        %v1187 = vstv %s1157
        %v1188 = vsub.f32 %v1131, %v1187
        %v1189 = vsub.f32 %v1132, %v1187
        %v1190 = vsub.f32 %v1133, %v1187
        %v1191 = vsub.f32 %v1134, %v1187
        %v1192 = vsub.f32 %v1135, %v1187
        %v1193 = vsub.f32 %v1136, %v1187
        %v1194 = vsub.f32 %v1137, %v1187
        %v1195 = vsub.f32 %v1138, %v1187
        %s1196 = sadd.f32 %s1186, 1e-05
        %v1197 = vstv %s1196
        %v1198 = vrsqrt.pop %v1197
        %s1199 = vtos %v1198
        %v1200 = vstv %s1199
        %v1201 = vmul.f32 %v1188, %v1200
        %v1202 = vmul.f32 %v1189, %v1200
        %v1203 = vmul.f32 %v1190, %v1200
        %v1204 = vmul.f32 %v1191, %v1200
        %v1205 = vmul.f32 %v1192, %v1200
        %v1206 = vmul.f32 %v1193, %v1200
        %v1207 = vmul.f32 %v1194, %v1200
        %v1208 = vmul.f32 %v1195, %v1200
        %v1209 = vpack.c.bf16 %v1203, %v1201
        %v1210 = vpack.c.bf16 %v1204, %v1202
        %v1211 = vpack.c.bf16 %v1207, %v1205
        %v1212 = vpack.c.bf16 %v1208, %v1206
        %1214 = vset.pattern.permute.xlu0 0
        %1215 = vperm.xlu0 %1214, %v445
        %v1216 = vpop.permute.xlu0 %1215
        %1219 = vset.pattern.permute.xlu0 0
        %1220 = vperm.xlu0 %1219, %v446
        %v1221 = vpop.permute.xlu0 %1220
        %1224 = vset.pattern.permute.xlu0 0
        %1225 = vperm.xlu0 %1224, %v447
        %v1226 = vpop.permute.xlu0 %1225
        %1229 = vset.pattern.permute.xlu0 0
        %1230 = vperm.xlu0 %1229, %v448
        %v1231 = vpop.permute.xlu0 %1230
        %1234 = vset.pattern.permute.xlu0 0
        %1235 = vperm.xlu0 %1234, %v449
        %v1236 = vpop.permute.xlu0 %1235
        %1239 = vset.pattern.permute.xlu0 0
        %1240 = vperm.xlu0 %1239, %v450
        %v1241 = vpop.permute.xlu0 %1240
        %1244 = vset.pattern.permute.xlu0 0
        %1245 = vperm.xlu0 %1244, %v451
        %v1246 = vpop.permute.xlu0 %1245
        %1249 = vset.pattern.permute.xlu0 0
        %1250 = vperm.xlu0 %1249, %v452
        %v1251 = vpop.permute.xlu0 %1250
        %v1261 = vunpack.c.l.b16 %v437
        %v1262 = vunpack.c.l.b16 %v438
        %v1263 = vunpack.c.l.b16 %v439
        %v1264 = vunpack.c.l.b16 %v440
        %v1265 = vunpack.c.l.b16 %v441
        %v1266 = vunpack.c.l.b16 %v442
        %v1267 = vunpack.c.l.b16 %v443
        %v1268 = vunpack.c.l.b16 %v444
        %v1269 = vpack.c.b16 %v1262, %v1261
        %v1270 = vpack.c.b16 %v1264, %v1263
        %v1271 = vpack.c.b16 %v1266, %v1265
        %v1272 = vpack.c.b16 %v1268, %v1267
        %v1274 = vsel %vm611, %v1269, 0
        %v1277 = vsel %vm611, %v1270, 0
        %v1280 = vsel %vm611, %v1271, 0
        %v1283 = vsel %vm611, %v1272, 0
        %1285 = vmatprep.subr.bf16.mxu0 %v1210
        %1286 = vmatpush1.bf16.msra.mxu0 %v1209
        %1287 = vmatprep.subr.bf16.mxu0 %v1212
        %1288 = vmatpush1.bf16.msra.mxu0 %v1211
        %1289 = vmatprep.subr.bf16.mxu0 0
        %1290 = vmatpush1.bf16.msra.mxu0 0
        %1291 = vmatprep.subr.bf16.mxu0 0
        %1292 = vmatpush1.bf16.msra.mxu0 0
        %1293 = vmatprep.subr.bf16.mxu0 0
        %1294 = vmatpush1.bf16.msra.mxu0 0
        %1295 = vmatprep.subr.bf16.mxu0 0
        %1296 = vmatpush1.bf16.msra.mxu0 0
        %1297 = vmatprep.subr.bf16.mxu0 0
        %1298 = vmatpush1.bf16.msra.mxu0 0
        %1299 = vmatprep.subr.bf16.mxu0 0
        %1300 = vmatpush1.bf16.msra.mxu0 0
        %1301 = vmatprep.subr.bf16.mxu0 0
        %1302 = vmatpush1.bf16.msra.mxu0 0
        %1303 = vmatprep.subr.bf16.mxu0 0
        %1304 = vmatpush1.bf16.msra.mxu0 0
        %1305 = vmatprep.subr.bf16.mxu0 0
        %1306 = vmatpush1.bf16.msra.mxu0 0
        %1307 = vmatprep.subr.bf16.mxu0 0
        %1308 = vmatpush1.bf16.msra.mxu0 0
        %1309 = vmatprep.subr.bf16.mxu0 0
        %1310 = vmatpush1.bf16.msra.mxu0 0
        %1311 = vmatprep.subr.bf16.mxu0 0
        %1312 = vmatpush1.bf16.msra.mxu0 0
        %1313 = vmatprep.subr.bf16.mxu0 0
        %1314 = vmatpush1.bf16.msra.mxu0 0
        %1315 = vmatprep.subr.bf16.mxu0 0
        %1316 = vmatpush1.bf16.msra.mxu0 0
        %1317 = vmatprep.mubr.bf16.mxu0 0
        %1318 = vmatmul.mubr.bf16.gmra.mrb[0].mxu0 %v1274
        %v1319 = vpop.f32.mrb[0].mxu0
        %v1320 = vadd.f32 %v1216, %v1319
        %v1321 = vpop.f32.mrb[0].mxu0
        %v1322 = vadd.f32 %v1216, %v1321
        %v1323 = vpop.f32.mrb[0].mxu0
        %v1324 = vadd.f32 %v1221, %v1323
        %v1325 = vpop.f32.mrb[0].mxu0
        %v1326 = vadd.f32 %v1221, %v1325
        %1327 = vmatprep.mubr.bf16.mxu0 0
        %1328 = vmatmul.mubr.bf16.gmra.mrb[0].mxu0 %v1277
        %v1329 = vpop.f32.mrb[0].mxu0
        %v1330 = vadd.f32 %v1226, %v1329
        %v1331 = vpop.f32.mrb[0].mxu0
        %v1332 = vadd.f32 %v1226, %v1331
        %v1333 = vpop.f32.mrb[0].mxu0
        %v1334 = vadd.f32 %v1231, %v1333
        %v1335 = vpop.f32.mrb[0].mxu0
        %v1336 = vadd.f32 %v1231, %v1335
        %1337 = vmatprep.mubr.bf16.mxu0 0
        %1338 = vmatmul.mubr.bf16.gmra.mrb[0].mxu0 %v1280
        %v1339 = vpop.f32.mrb[0].mxu0
        %v1340 = vadd.f32 %v1236, %v1339
        %v1341 = vpop.f32.mrb[0].mxu0
        %v1342 = vadd.f32 %v1236, %v1341
        %v1343 = vpop.f32.mrb[0].mxu0
        %v1344 = vadd.f32 %v1241, %v1343
        %v1345 = vpop.f32.mrb[0].mxu0
        %v1346 = vadd.f32 %v1241, %v1345
        %1347 = vmatprep.mubr.bf16.mxu0 0
        %1348 = vmatmul.mubr.bf16.gmra.mrb[0].mxu0 %v1283
        %v1349 = vpop.f32.mrb[0].mxu0
        %v1350 = vadd.f32 %v1246, %v1349
        %v1351 = vpop.f32.mrb[0].mxu0
        %v1352 = vadd.f32 %v1246, %v1351
        %v1353 = vpop.f32.mrb[0].mxu0
        %v1354 = vadd.f32 %v1251, %v1353
        %v1355 = vpop.f32.mrb[0].mxu0
        %v1356 = vadd.f32 %v1251, %v1355
        %1357 = vdwg.mxu0
        %v1358 = vsub.f32 0.0, %v1320
        %v1359 = vsub.f32 0.0, %v1322
        %v1360 = vsub.f32 0.0, %v1324
        %v1361 = vsub.f32 0.0, %v1326
        %v1362 = vsub.f32 0.0, %v1330
        %v1363 = vsub.f32 0.0, %v1332
        %v1364 = vsub.f32 0.0, %v1334
        %v1365 = vsub.f32 0.0, %v1336
        %v1366 = vsub.f32 0.0, %v1340
        %v1367 = vsub.f32 0.0, %v1342
        %v1368 = vsub.f32 0.0, %v1344
        %v1369 = vsub.f32 0.0, %v1346
        %v1370 = vsub.f32 0.0, %v1350
        %v1371 = vsub.f32 0.0, %v1352
        %v1372 = vsub.f32 0.0, %v1354
        %v1373 = vsub.f32 0.0, %v1356
        %v1374 = vmul.f32 %v1358, 1.442695
        %v1375 = vpow.pop %v1374
        %v1376 = vmul.f32 %v1359, 1.442695
        %v1377 = vpow.pop %v1376
        %v1378 = vmul.f32 %v1360, 1.442695
        %v1379 = vpow.pop %v1378
        %v1380 = vmul.f32 %v1361, 1.442695
        %v1381 = vpow.pop %v1380
        %v1382 = vmul.f32 %v1362, 1.442695
        %v1383 = vpow.pop %v1382
        %v1384 = vmul.f32 %v1363, 1.442695
        %v1385 = vpow.pop %v1384
        %v1386 = vmul.f32 %v1364, 1.442695
        %v1387 = vpow.pop %v1386
        %v1388 = vmul.f32 %v1365, 1.442695
        %v1389 = vpow.pop %v1388
        %v1390 = vmul.f32 %v1366, 1.442695
        %v1391 = vpow.pop %v1390
        %v1392 = vmul.f32 %v1367, 1.442695
        %v1393 = vpow.pop %v1392
        %v1394 = vmul.f32 %v1368, 1.442695
        %v1395 = vpow.pop %v1394
        %v1396 = vmul.f32 %v1369, 1.442695
        %v1397 = vpow.pop %v1396
        %v1398 = vmul.f32 %v1370, 1.442695
        %v1399 = vpow.pop %v1398
        %v1400 = vmul.f32 %v1371, 1.442695
        %v1401 = vpow.pop %v1400
        %v1402 = vmul.f32 %v1372, 1.442695
        %v1403 = vpow.pop %v1402
        %v1404 = vmul.f32 %v1373, 1.442695
        %v1405 = vpow.pop %v1404
        %v1406 = vadd.f32 %v1375, 1.0
        %v1407 = vadd.f32 %v1377, 1.0
        %v1408 = vadd.f32 %v1379, 1.0
        %v1409 = vadd.f32 %v1381, 1.0
        %v1410 = vadd.f32 %v1383, 1.0
        %v1411 = vadd.f32 %v1385, 1.0
        %v1412 = vadd.f32 %v1387, 1.0
        %v1413 = vadd.f32 %v1389, 1.0
        %v1414 = vadd.f32 %v1391, 1.0
        %v1415 = vadd.f32 %v1393, 1.0
        %v1416 = vadd.f32 %v1395, 1.0
        %v1417 = vadd.f32 %v1397, 1.0
        %v1418 = vadd.f32 %v1399, 1.0
        %v1419 = vadd.f32 %v1401, 1.0
        %v1420 = vadd.f32 %v1403, 1.0
        %v1421 = vadd.f32 %v1405, 1.0
        %v1422 = vrcp.pop %v1406
        %v1423 = vrcp.pop %v1407
        %v1424 = vrcp.pop %v1408
        %v1425 = vrcp.pop %v1409
        %v1426 = vrcp.pop %v1410
        %v1427 = vrcp.pop %v1411
        %v1428 = vrcp.pop %v1412
        %v1429 = vrcp.pop %v1413
        %v1430 = vrcp.pop %v1414
        %v1431 = vrcp.pop %v1415
        %v1432 = vrcp.pop %v1416
        %v1433 = vrcp.pop %v1417
        %v1434 = vrcp.pop %v1418
        %v1435 = vrcp.pop %v1419
        %v1436 = vrcp.pop %v1420
        %v1437 = vrcp.pop %v1421
        %v1438 = vmul.f32 %v1320, %v1422
        %v1439 = vmul.f32 %v1322, %v1423
        %v1440 = vmul.f32 %v1324, %v1424
        %v1441 = vmul.f32 %v1326, %v1425
        %v1442 = vmul.f32 %v1330, %v1426
        %v1443 = vmul.f32 %v1332, %v1427
        %v1444 = vmul.f32 %v1334, %v1428
        %v1445 = vmul.f32 %v1336, %v1429
        %v1446 = vmul.f32 %v1340, %v1430
        %v1447 = vmul.f32 %v1342, %v1431
        %v1448 = vmul.f32 %v1344, %v1432
        %v1449 = vmul.f32 %v1346, %v1433
        %v1450 = vmul.f32 %v1350, %v1434
        %v1451 = vmul.f32 %v1352, %v1435
        %v1452 = vmul.f32 %v1354, %v1436
        %v1453 = vmul.f32 %v1356, %v1437
        %v1454 = vpack.c.bf16 %v1440, %v1438
        %v1455 = vpack.c.bf16 %v1441, %v1439
        %v1456 = vpack.c.bf16 %v1444, %v1442
        %v1457 = vpack.c.bf16 %v1445, %v1443
        %v1458 = vpack.c.bf16 %v1448, %v1446
        %v1459 = vpack.c.bf16 %v1449, %v1447
        %v1460 = vpack.c.bf16 %v1452, %v1450
        %v1461 = vpack.c.bf16 %v1453, %v1451
        %1463 = vset.pattern.permute.xlu0 0
        %1464 = vperm.xlu0 %1463, %v457
        %v1465 = vpop.permute.xlu0 %1464
        %1468 = vset.pattern.permute.xlu0 0
        %1469 = vperm.xlu0 %1468, %v458
        %v1470 = vpop.permute.xlu0 %1469
        %1473 = vset.pattern.permute.xlu0 0
        %1474 = vperm.xlu0 %1473, %v459
        %v1475 = vpop.permute.xlu0 %1474
        %1478 = vset.pattern.permute.xlu0 0
        %1479 = vperm.xlu0 %1478, %v460
        %v1480 = vpop.permute.xlu0 %1479
        %v1486 = vunpack.c.l.b16 %v453
        %v1487 = vunpack.c.l.b16 %v454
        %v1488 = vunpack.c.l.b16 %v455
        %v1489 = vunpack.c.l.b16 %v456
        %v1490 = vpack.c.b16 %v1487, %v1486
        %v1491 = vpack.c.b16 %v1489, %v1488
        %vm1492 = vcmask 523264
        %v1494 = vsel %vm1492, %v1490, 0
        %v1497 = vsel %vm1492, %v1491, 0
        %1499 = vmatprep.subr.bf16.mxu0 %v1455
        %1500 = vmatpush1.bf16.msra.mxu0 %v1454
        %1501 = vmatprep.subr.bf16.mxu0 %v1457
        %1502 = vmatpush1.bf16.msra.mxu0 %v1456
        %1503 = vmatprep.subr.bf16.mxu0 %v1459
        %1504 = vmatpush1.bf16.msra.mxu0 %v1458
        %1505 = vmatprep.subr.bf16.mxu0 %v1461
        %1506 = vmatpush1.bf16.msra.mxu0 %v1460
        %1507 = vmatprep.subr.bf16.mxu0 0
        %1508 = vmatpush1.bf16.msra.mxu0 0
        %1509 = vmatprep.subr.bf16.mxu0 0
        %1510 = vmatpush1.bf16.msra.mxu0 0
        %1511 = vmatprep.subr.bf16.mxu0 0
        %1512 = vmatpush1.bf16.msra.mxu0 0
        %1513 = vmatprep.subr.bf16.mxu0 0
        %1514 = vmatpush1.bf16.msra.mxu0 0
        %1515 = vmatprep.subr.bf16.mxu0 0
        %1516 = vmatpush1.bf16.msra.mxu0 0
        %1517 = vmatprep.subr.bf16.mxu0 0
        %1518 = vmatpush1.bf16.msra.mxu0 0
        %1519 = vmatprep.subr.bf16.mxu0 0
        %1520 = vmatpush1.bf16.msra.mxu0 0
        %1521 = vmatprep.subr.bf16.mxu0 0
        %1522 = vmatpush1.bf16.msra.mxu0 0
        %1523 = vmatprep.subr.bf16.mxu0 0
        %1524 = vmatpush1.bf16.msra.mxu0 0
        %1525 = vmatprep.subr.bf16.mxu0 0
        %1526 = vmatpush1.bf16.msra.mxu0 0
        %1527 = vmatprep.subr.bf16.mxu0 0
        %1528 = vmatpush1.bf16.msra.mxu0 0
        %1529 = vmatprep.subr.bf16.mxu0 0
        %1530 = vmatpush1.bf16.msra.mxu0 0
        %1531 = vmatprep.mubr.bf16.mxu0 0
        %1532 = vmatmul.mubr.bf16.gmra.mrb[0].mxu0 %v1494
        %v1533 = vpop.f32.mrb[0].mxu0
        %v1534 = vadd.f32 %v1465, %v1533
        %v1535 = vpop.f32.mrb[0].mxu0
        %v1536 = vadd.f32 %v1465, %v1535
        %v1537 = vpop.f32.mrb[0].mxu0
        %v1538 = vadd.f32 %v1470, %v1537
        %v1539 = vpop.f32.mrb[0].mxu0
        %v1540 = vadd.f32 %v1470, %v1539
        %1541 = vmatprep.mubr.bf16.mxu0 0
        %1542 = vmatmul.mubr.bf16.gmra.mrb[0].mxu0 %v1497
        %v1543 = vpop.f32.mrb[0].mxu0
        %v1544 = vadd.f32 %v1475, %v1543
        %v1545 = vpop.f32.mrb[0].mxu0
        %v1546 = vadd.f32 %v1475, %v1545
        %v1547 = vpop.f32.mrb[0].mxu0
        %v1548 = vadd.f32 %v1480, %v1547
        %v1549 = vpop.f32.mrb[0].mxu0
        %v1550 = vadd.f32 %v1480, %v1549
        %1551 = vdwg.mxu0
        %v1552 = vadd.f32 %v1131, %v1534
        %v1553 = vadd.f32 %v1132, %v1536
        %v1554 = vadd.f32 %v1133, %v1538
        %v1555 = vadd.f32 %v1134, %v1540
        %v1556 = vadd.f32 %v1135, %v1544
        %v1557 = vadd.f32 %v1136, %v1546
        %v1558 = vadd.f32 %v1137, %v1548
        %v1559 = vadd.f32 %v1138, %v1550
        %1560 = vst [vmem:[%s377] sm:$0xff] %v1552
        %1561 = vst [vmem:[%s377 + $0x8] sm:$0xff] %v1553
        %1562 = vst [vmem:[%s377 + $0x10] sm:$0xff] %v1554
        %1563 = vst [vmem:[%s377 + $0x18] sm:$0xff] %v1555
        %1564 = vst [vmem:[%s377 + $0x20] sm:$0xff] %v1556
        %1565 = vst [vmem:[%s377 + $0x28] sm:$0xff] %v1557
        %1566 = vst [vmem:[%s377 + $0x30] sm:$0xff] %v1558
        %1567 = vst [vmem:[%s377 + $0x38] sm:$0xff] %v1559
        %s1568 = sand.u32 %s250, 1
        %s1569 = scalar_lea.sflag [#allocation4], %s1568
        %s1570 = sand.u32 %s250, 1
        %s1571 = smul.addr %s1570, 64
        %s1572 = scalar_lea.vmem [#allocation5], %s1571
        // Predicated region
        $region65: #{tpu_custom_call.1} parent=59 // pred_check
          %p1573 = pneg %p260
        $region66: #{tpu_custom_call.1} parent=59 // pred_check_branch
          %1575 = sbr.rel (%p1573) target = $region68
        $region67: #{tpu_custom_call.1} parent=59 // pred_region
          %s1577 = ssub.s32 1024, 1024
          %1578 = vsyncadd %s1569, %s1577
          %s1579 = smul.addr %s27, 8
          %s1580 = smul.addr %s1579, 128
          %s1581 = scalar_lea.hbm %s10, %s1580
          %s1582 = sshll.u32 %s1572, 4
          %s1583 = int_to_ptr.vmem [resolvable:$true] %s1582
          %1588 = dma.vmem_to_hbm [thread:$0]  %s1583, 1024, %s1581, %s1569, 256, 256, 16
        $region68: #{tpu_custom_call.1} parent=59 // pred_fallthru
          _
      $region60: #{tpu_custom_call.1} parent=5 // pred_fallthru
        _
      %p1589 = scmp.le.s32.totalorder 2, %s22
      // Predicated region
      $region69: #{tpu_custom_call.1} parent=5 // pred_check
        %p1590 = pneg %p1589
      $region70: #{tpu_custom_call.1} parent=5 // pred_check_branch
        %1592 = sbr.rel (%p1590) target = $region72
      $region71: #{tpu_custom_call.1} parent=5 // pred_region
        %s1593 = ssub.s32 %s22, 2
        // Predicated region
        $region73: #{tpu_custom_call.1} parent=71 // pred_check
          %p1594 = pneg %p266
        $region74: #{tpu_custom_call.1} parent=71 // pred_check_branch
          %1596 = sbr.rel (%p1594) target = $region76
        $region75: #{tpu_custom_call.1} parent=71 // pred_region
          %s1597 = sand.u32 %s251, 1
          %s1598 = scalar_lea.sflag [#allocation4], %s1597
          %s1599 = sand.u32 %s251, 1
          %s1600 = smul.addr %s1599, 64
          %s1601 = scalar_lea.vmem [#allocation5], %s1600
          %1602 = dma.done %s1598, 1024
        $region76: #{tpu_custom_call.1} parent=71 // pred_fallthru
          _
      $region72: #{tpu_custom_call.1} parent=5 // pred_fallthru
        _
    $region6: #{tpu_custom_call.1} parent=1 // loop_footer
      %s26 = sadd.s32 1, %s22
    $region7: #{tpu_custom_call.1} parent=1 // loop_footer_branch
      %21 = sbr.rel target = $region3
    $region8: #{tpu_custom_call.1} parent=1 // loop_exit
      _
    %1603 = vsyncpa [#allocation3], 1
    %s1604 = scalar_lea.sflag [#allocation3], 1
    %1605 = vsyncpa %s1604, 1
    %1606 = vsyncpa [#allocation4], 1
    %s1607 = scalar_lea.sflag [#allocation4], 1
    %1608 = vsyncpa %s1607, 1

</llo_original>
